<compile_context>
chip_gen: v7x
topology: tpu7x:2x2x1
jax: 0.10.0
libtpu: 0.0.40
codegen_flags: <defaults>
</compile_context>

<pallas_src>
import jax
import jax.numpy as jnp
import numpy as np
from jax.experimental import pallas as pl
from jax.experimental.pallas import tpu as pltpu


def _head_kernel(lens_ref,                                   # scalar prefetch: (N,) int32, SMEM
                 x_ref, w1t_ref, b1_ref, wa_ref, ba_ref, wft_ref, bf_ref,
                 o_ref):
    nb, t, d = x_ref.shape

    # ---- fused first layer: one (NB*T, D) @ (D, D) bf16 GEMM, f32 accumulation ----
    x = x_ref[...].reshape(nb * t, d)                                        # bf16
    h = jnp.tanh(
        jnp.dot(x, w1t_ref[...], preferred_element_type=jnp.float32)
        + b1_ref[...])                                                       # (NB*T, D) f32
    h3 = h.reshape(nb, t, d)                                                 # (NB, T, D)

    # ---- attention logits for all rows at once: (NB, T), T on lanes ---------------
    # VPU multiply + XLU lane reduction; hides under MXU slack.  Only move this to an
    # MXU matvec if post-bf16 profiling shows VALU/XLU as the critical unit.
    logits = jnp.sum(h3 * wa_ref[...], axis=-1) + ba_ref[0]                  # (NB, T) f32

    # ---- mask rebuilt in-kernel from scalar-prefetched lengths (no mask DMA) ------
    row0 = pl.program_id(0) * nb
    tok = jax.lax.broadcasted_iota(jnp.int32, (nb, t), 1)
    row = jax.lax.broadcasted_iota(jnp.int32, (nb, t), 0)
    lens_b = jnp.zeros((nb, t), jnp.int32)
    for i in range(nb):                                      # nb is small & static
        lens_b = jnp.where(row == i, lens_ref[row0 + i], lens_b)
    logits = jnp.where(tok < lens_b, logits, jnp.float32(-1e20))  # ParlAI neginf(f32)

    # ---- masked softmax over tokens (dim=1 in the torch module) -------------------
    logits = logits - jnp.max(logits, axis=-1, keepdims=True)
    e = jnp.exp(logits)
    denom = jnp.sum(e, axis=-1, keepdims=True)
    attn = e * pl.reciprocal(denom, approx=True)                             # (NB, T)

    # ---- context + final projection; OUT padded to 128 lanes -> dense store -------
    # TODO(synk): for very long T on v7x (h slab > VMEM budget) restructure this into
    # a T-chunked online-softmax accumulation instead of holding full h.
    ctx = jnp.sum(h3 * attn[:, :, None], axis=1)                             # (NB, D) f32
    out = jnp.dot(ctx.astype(jnp.bfloat16), wft_ref[...],
                  preferred_element_type=jnp.float32) + bf_ref[...]          # (NB, OUT_PAD)
    o_ref[...] = out[:, None, :]


def _vmem_capacity_bytes():
    """Best-effort physical VMEM per TensorCore (v5e/v6e: 128 MiB, v7x: 64 MiB)."""
    try:
        return int(pltpu.get_tpu_info().vmem_capacity_bytes)
    except Exception:
        pass
    try:
        kind = jax.devices()[0].device_kind.lower()
    except Exception:
        kind = ""
    if "v7" in kind or "7x" in kind:
        return 64 << 20
    return 128 << 20


def _estimate_step_vmem(nb, T, D, out_pad):
    x_buf = 2 * nb * T * D * 2              # double-buffered bf16 x tile
    h_tmp = nb * T * D * 4                  # materialized f32 h slab
    wts = (D * D + D * out_pad) * 2         # bf16 W1^T + Wf^T (single-buffered)
    bias = (2 * D + out_pad + 1) * 4
    o_buf = 2 * nb * out_pad * 4            # double-buffered output tile
    return x_buf + h_tmp + wts + bias + o_buf


def _pick_nb(N, T, D, out_pad, vmem_cap):
    budget = int(0.7 * vmem_cap)            # headroom for compiler temps / relayouts
    fits = [c for c in (16, 8, 4, 2, 1)
            if N % c == 0 and _estimate_step_vmem(c, T, D, out_pad) <= budget]
    if not fits:
        return 1
    # Prefer an even number of >=2 grid steps so both v7x TensorCores get balanced work.
    for c in fits:
        if (N // c) >= 2 and (N // c) % 2 == 0:
            return c
    for c in fits:
        if (N // c) >= 2:
            return c
    return fits[0]


def classification_head(x, mask, params, *, nb=None, single_buffer_weights=True):
    """x: (N, T, D) float32, mask: (N, T) bool -> (N, OUT) float32.

    The kernel rebuilds the mask from per-row valid-token counts (padding masks,
    as used by the dialogue model).
    """
    N, T, D = x.shape
    OUT = params["Wf"].shape[0]
    out_pad = ((OUT + 127) // 128) * 128

    vmem_cap = _vmem_capacity_bytes()
    if nb is None:
        nb = _pick_nb(N, T, D, out_pad, vmem_cap)
    assert N % nb == 0, "batch must be divisible by the per-step block"
    est = _estimate_step_vmem(nb, T, D, out_pad)
    vmem_limit = int(min(vmem_cap, max(2 * est + (2 << 20), 32 << 20)))

    # ---- parameter plumbing: bf16 MXU operands, f32 everywhere else ---------------
    x_bf = x.astype(jnp.bfloat16)                                # halves x DMA bytes
    w1t = params["W1"].T.astype(jnp.bfloat16)                    # (D, D)
    b1 = params["b1"].reshape(1, D).astype(jnp.float32)
    wa = params["Wa"].reshape(1, D).astype(jnp.float32)
    ba = params["ba"].reshape(1).astype(jnp.float32)             # scalar -> SMEM
    # pad OUT -> 128 lanes so the final GEMM + store are lane-dense
    wft = jnp.zeros((D, out_pad), jnp.bfloat16).at[:, :OUT].set(
        params["Wf"].T.astype(jnp.bfloat16))
    bf = jnp.zeros((1, out_pad), jnp.float32).at[:, :OUT].set(
        params["bf"].astype(jnp.float32))
    # TODO(synk): arbitrary (non-prefix) masks would need the mask streamed as a VMEM
    # tile; the dialogue model only uses padding masks, so lengths are sufficient.
    lengths = jnp.sum(mask.astype(jnp.int32), axis=-1).astype(jnp.int32)     # (N,)

    def _const_spec(shape):
        imap = lambda n, lens: (0,) * len(shape)
        if single_buffer_weights and hasattr(pl, "Buffered"):
            # Constant index_map -> never re-fetched; a single buffer saves VMEM.
            return pl.BlockSpec(shape, imap, pipeline_mode=pl.Buffered(1))
        return pl.BlockSpec(shape, imap)

    out3 = pl.pallas_call(
        _head_kernel,
        out_shape=jax.ShapeDtypeStruct((N, 1, out_pad), jnp.float32),
        grid_spec=pltpu.PrefetchScalarGridSpec(
            num_scalar_prefetch=1,                               # lengths -> SMEM
            grid=(N // nb,),
            in_specs=[
                pl.BlockSpec((nb, T, D), lambda n, lens: (n, 0, 0)),   # x (bf16)
                _const_spec((D, D)),                                   # W1^T (bf16)
                _const_spec((1, D)),                                   # b1
                _const_spec((1, D)),                                   # Wa
                pl.BlockSpec(memory_space=pltpu.MemorySpace.SMEM),     # ba scalar
                _const_spec((D, out_pad)),                             # Wf^T (bf16)
                _const_spec((1, out_pad)),                             # bf
            ],
            out_specs=pl.BlockSpec((nb, 1, out_pad), lambda n, lens: (n, 0, 0)),
        ),
        compiler_params=pltpu.CompilerParams(
            dimension_semantics=("parallel",),
            vmem_limit_bytes=vmem_limit),
    )(lengths, x_bf, w1t, b1, wa, ba, wft, bf)
    return out3[:, 0, :OUT]


def reference_forward(x, mask, params):
    """Pure-JAX mirror of the PyTorch forward (f32 throughout)."""
    h = jnp.tanh(x @ params["W1"].T + params["b1"])
    a = (h @ params["Wa"].T)[..., 0] + params["ba"][0]
    a = jnp.where(mask, a, jnp.float32(-1e20))
    attn = jax.nn.softmax(a, axis=1)
    ctx = jnp.einsum('btd,bt->bd', h, attn)
    return ctx @ params["Wf"].T + params["bf"]


if __name__ == "__main__":
    N, T, D, OUT = 4, 8, 128, 3

    key = jax.random.PRNGKey(0)
    ks = jax.random.split(key, 7)
    params = {
        "W1": 0.05 * jax.random.normal(ks[0], (D, D), jnp.float32),   # linear.weight
        "b1": 0.05 * jax.random.normal(ks[1], (D,), jnp.float32),     # linear.bias
        "Wa": 0.05 * jax.random.normal(ks[2], (1, D), jnp.float32),   # attn_wei.weight
        "ba": 0.05 * jax.random.normal(ks[3], (1,), jnp.float32),     # attn_wei.bias
        "Wf": 0.05 * jax.random.normal(ks[4], (OUT, D), jnp.float32), # final.weight
        "bf": 0.05 * jax.random.normal(ks[5], (OUT,), jnp.float32),   # final.bias
    }
    x = jax.random.normal(ks[6], (N, T, D), jnp.float32)

    # variable-length token masks (at least one valid token per row)
    lengths = jnp.array([T, T - 3, T - 5, 1], jnp.int32)
    mask = jnp.arange(T)[None, :] < lengths[:, None]                  # (N, T) bool

    try:
        out = jax.block_until_ready(classification_head(x, mask, params))
    except Exception:
        # Some jax versions reject pipeline_mode=pl.Buffered(1); retry double-buffered.
        out = jax.block_until_ready(
            classification_head(x, mask, params, single_buffer_weights=False))

    ref = jax.block_until_ready(reference_forward(x, mask, params))
    # Tolerance accounts for bf16 MXU operands (f32 accumulation) + approx reciprocal.
    np.testing.assert_allclose(np.asarray(out), np.asarray(ref),
                               rtol=2e-2, atol=1e-2)
    assert out.shape == (N, OUT)

    print("KERNEL_OK")
</pallas_src>

<mosaic_0001>
module attributes {stable_mosaic.version = 11 : i64} {
  func.func @_head_kernel(%arg0: i32, %arg1: memref<4xi32, #tpu.memory_space<smem>>, %arg2: memref<2x8x128xbf16, #tpu.memory_space<vmem>>, %arg3: memref<128x128xbf16, #tpu.memory_space<vmem>>, %arg4: memref<1x128xf32, #tpu.memory_space<vmem>>, %arg5: memref<1x128xf32, #tpu.memory_space<vmem>>, %arg6: memref<1xf32, #tpu.memory_space<smem>>, %arg7: memref<128x128xbf16, #tpu.memory_space<vmem>>, %arg8: memref<1x128xf32, #tpu.memory_space<vmem>>, %arg9: memref<2x1x128xf32, #tpu.memory_space<vmem>>) attributes {dimension_semantics = [#tpu.dimension_semantics<parallel>], iteration_bounds = array<i64: 2>, scalar_prefetch = 1 : i64, scratch_operands = 0 : i64, tpu.core_type = #tpu.core_type<tc>, window_params = [{transform_indices = @transform_0, window_bounds = array<i64: 2, 8, 128>}, {pipeline_mode = #tpu.pipeline_mode<synchronous>, transform_indices = @transform_1, window_bounds = array<i64: 128, 128>}, {pipeline_mode = #tpu.pipeline_mode<synchronous>, transform_indices = @transform_2, window_bounds = array<i64: 1, 128>}, {pipeline_mode = #tpu.pipeline_mode<synchronous>, transform_indices = @transform_3, window_bounds = array<i64: 1, 128>}, {transform_indices = @transform_4, window_bounds = array<i64: 1>}, {pipeline_mode = #tpu.pipeline_mode<synchronous>, transform_indices = @transform_5, window_bounds = array<i64: 128, 128>}, {pipeline_mode = #tpu.pipeline_mode<synchronous>, transform_indices = @transform_6, window_bounds = array<i64: 1, 128>}, {transform_indices = @transform_7, window_bounds = array<i64: 2, 1, 128>}]} {
    %c0 = arith.constant 0 : index
    %c0_0 = arith.constant 0 : index
    %c0_1 = arith.constant 0 : index
    %0 = vector.load %arg2[%c0, %c0_0, %c0_1] : memref<2x8x128xbf16, #tpu.memory_space<vmem>>, vector<2x8x128xbf16>
    %1 = vector.shape_cast %0 : vector<2x8x128xbf16> to vector<16x128xbf16>
    %c0_2 = arith.constant 0 : index
    %c0_3 = arith.constant 0 : index
    %2 = vector.load %arg3[%c0_2, %c0_3] : memref<128x128xbf16, #tpu.memory_space<vmem>>, vector<128x128xbf16>
    %cst = arith.constant dense<0.000000e+00> : vector<16x128xf32>
    %3 = tpu.matmul %1, %2, %cst {dimension_numbers = #tpu.dot_dimension_numbers<[1], [0], [0], [1], [0, 0, 1, 1], [], []>} : vector<16x128xbf16>, vector<128x128xbf16>, vector<16x128xf32> -> vector<16x128xf32>
    %c0_4 = arith.constant 0 : index
    %c0_5 = arith.constant 0 : index
    %4 = vector.load %arg4[%c0_4, %c0_5] : memref<1x128xf32, #tpu.memory_space<vmem>>, vector<1x128xf32>
    %5 = vector.broadcast %4 : vector<1x128xf32> to vector<16x128xf32>
    %6 = arith.addf %3, %5 : vector<16x128xf32>
    %7 = math.tanh %6 : vector<16x128xf32>
    %8 = vector.shape_cast %7 : vector<16x128xf32> to vector<2x8x128xf32>
    %c0_6 = arith.constant 0 : index
    %c0_7 = arith.constant 0 : index
    %9 = vector.load %arg5[%c0_6, %c0_7] : memref<1x128xf32, #tpu.memory_space<vmem>>, vector<1x128xf32>
    %10 = vector.shape_cast %9 : vector<1x128xf32> to vector<1x1x128xf32>
    %11 = vector.broadcast %10 : vector<1x1x128xf32> to vector<2x8x128xf32>
    %12 = arith.mulf %8, %11 : vector<2x8x128xf32>
    %cst_8 = arith.constant dense<0.000000e+00> : vector<2x8xf32>
    %13 = vector.multi_reduction <add>, %12, %cst_8 [2] : vector<2x8x128xf32> to vector<2x8xf32>
    %c0_9 = arith.constant 0 : index
    %14 = memref.load %arg6[%c0_9] : memref<1xf32, #tpu.memory_space<smem>>
    %15 = vector.broadcast %14 : f32 to vector<2x8xf32>
    %16 = arith.addf %13, %15 : vector<2x8xf32>
    %c2_i32 = arith.constant 2 : i32
    %17 = arith.muli %arg0, %c2_i32 : i32
    %18 = tpu.iota {dimensions = array<i32: 1>} : vector<2x8xi32>
    %19 = tpu.iota {dimensions = array<i32: 0>} : vector<2x8xi32>
    %c0_i32 = arith.constant 0 : i32
    %20 = vector.broadcast %c0_i32 : i32 to vector<2x8xi32>
    %c0_i32_10 = arith.constant 0 : i32
    %21 = vector.broadcast %c0_i32_10 : i32 to vector<2x8xi32>
    %22 = arith.cmpi eq, %19, %21 : vector<2x8xi32>
    %c0_i32_11 = arith.constant 0 : i32
    %23 = arith.addi %17, %c0_i32_11 : i32
    %24 = arith.index_cast %23 : i32 to index
    %25 = memref.load %arg1[%24] : memref<4xi32, #tpu.memory_space<smem>>
    %26 = vector.broadcast %25 : i32 to vector<2x8xi32>
    %27 = arith.select %22, %26, %20 : vector<2x8xi1>, vector<2x8xi32>
    %c1_i32 = arith.constant 1 : i32
    %28 = vector.broadcast %c1_i32 : i32 to vector<2x8xi32>
    %29 = arith.cmpi eq, %19, %28 : vector<2x8xi32>
    %c1_i32_12 = arith.constant 1 : i32
    %30 = arith.addi %17, %c1_i32_12 : i32
    %31 = arith.index_cast %30 : i32 to index
    %32 = memref.load %arg1[%31] : memref<4xi32, #tpu.memory_space<smem>>
    %33 = vector.broadcast %32 : i32 to vector<2x8xi32>
    %34 = arith.select %29, %33, %27 : vector<2x8xi1>, vector<2x8xi32>
    %35 = arith.cmpi slt, %18, %34 : vector<2x8xi32>
    %cst_13 = arith.constant -1.000000e+20 : f32
    %36 = vector.broadcast %cst_13 : f32 to vector<2x8xf32>
    %37 = arith.select %35, %16, %36 : vector<2x8xi1>, vector<2x8xf32>
    %cst_14 = arith.constant dense<0xFF800000> : vector<2xf32>
    %38 = vector.multi_reduction <maximumf>, %37, %cst_14 [1] : vector<2x8xf32> to vector<2xf32>
    %39 = vector.shape_cast %38 : vector<2xf32> to vector<2x1xf32>
    %40 = vector.broadcast %39 : vector<2x1xf32> to vector<2x8xf32>
    %41 = arith.subf %37, %40 : vector<2x8xf32>
    %42 = math.exp %41 : vector<2x8xf32>
    %cst_15 = arith.constant dense<0.000000e+00> : vector<2xf32>
    %43 = vector.multi_reduction <add>, %42, %cst_15 [1] : vector<2x8xf32> to vector<2xf32>
    %44 = vector.shape_cast %43 : vector<2xf32> to vector<2x1xf32>
    %45 = tpu.reciprocal %44 {approx = true} : vector<2x1xf32> -> vector<2x1xf32>
    %46 = vector.broadcast %45 : vector<2x1xf32> to vector<2x8xf32>
    %47 = arith.mulf %42, %46 : vector<2x8xf32>
    %48 = vector.shape_cast %47 : vector<2x8xf32> to vector<2x8x1xf32>
    %49 = vector.broadcast %48 : vector<2x8x1xf32> to vector<2x8x128xf32>
    %50 = arith.mulf %8, %49 : vector<2x8x128xf32>
    %cst_16 = arith.constant dense<0.000000e+00> : vector<2x128xf32>
    %51 = vector.multi_reduction <add>, %50, %cst_16 [1] : vector<2x8x128xf32> to vector<2x128xf32>
    %52 = arith.truncf %51 : vector<2x128xf32> to vector<2x128xbf16>
    %c0_17 = arith.constant 0 : index
    %c0_18 = arith.constant 0 : index
    %53 = vector.load %arg7[%c0_17, %c0_18] : memref<128x128xbf16, #tpu.memory_space<vmem>>, vector<128x128xbf16>
    %cst_19 = arith.constant dense<0.000000e+00> : vector<2x128xf32>
    %54 = tpu.matmul %52, %53, %cst_19 {dimension_numbers = #tpu.dot_dimension_numbers<[1], [0], [0], [1], [0, 0, 1, 1], [], []>} : vector<2x128xbf16>, vector<128x128xbf16>, vector<2x128xf32> -> vector<2x128xf32>
    %c0_20 = arith.constant 0 : index
    %c0_21 = arith.constant 0 : index
    %55 = vector.load %arg8[%c0_20, %c0_21] : memref<1x128xf32, #tpu.memory_space<vmem>>, vector<1x128xf32>
    %56 = vector.broadcast %55 : vector<1x128xf32> to vector<2x128xf32>
    %57 = arith.addf %54, %56 : vector<2x128xf32>
    %58 = vector.shape_cast %57 : vector<2x128xf32> to vector<2x1x128xf32>
    %c0_22 = arith.constant 0 : index
    %c0_23 = arith.constant 0 : index
    %c0_24 = arith.constant 0 : index
    %59 = vector.load %arg9[%c0_22, %c0_23, %c0_24] : memref<2x1x128xf32, #tpu.memory_space<vmem>>, vector<2x1x128xf32>
    tpu.vector_store %arg9[%c0_22, %c0_23, %c0_24], %58 {strides = array<i32>} : memref<2x1x128xf32, #tpu.memory_space<vmem>>, vector<2x1x128xf32>,
    return
  }
  func.func @transform_0(%arg0: i32, %arg1: memref<4xi32, #tpu.memory_space<smem>>) -> (i32, i32, i32) {
    %c0_i32 = arith.constant 0 : i32
    %c0_i32_0 = arith.constant 0 : i32
    %c0_i32_1 = arith.constant 0 : i32
    return %arg0, %c0_i32, %c0_i32_0 : i32, i32, i32
  }
  func.func @transform_1(%arg0: i32, %arg1: memref<4xi32, #tpu.memory_space<smem>>) -> (i32, i32) {
    %c0_i32 = arith.constant 0 : i32
    %c0_i32_0 = arith.constant 0 : i32
    %c0_i32_1 = arith.constant 0 : i32
    return %c0_i32, %c0_i32_0 : i32, i32
  }
  func.func @transform_2(%arg0: i32, %arg1: memref<4xi32, #tpu.memory_space<smem>>) -> (i32, i32) {
    %c0_i32 = arith.constant 0 : i32
    %c0_i32_0 = arith.constant 0 : i32
    %c0_i32_1 = arith.constant 0 : i32
    return %c0_i32, %c0_i32_0 : i32, i32
  }
  func.func @transform_3(%arg0: i32, %arg1: memref<4xi32, #tpu.memory_space<smem>>) -> (i32, i32) {
    %c0_i32 = arith.constant 0 : i32
    %c0_i32_0 = arith.constant 0 : i32
    %c0_i32_1 = arith.constant 0 : i32
    return %c0_i32, %c0_i32_0 : i32, i32
  }
  func.func @transform_4(%arg0: i32, %arg1: memref<4xi32, #tpu.memory_space<smem>>) -> i32 {
    %c0_i32 = arith.constant 0 : i32
    %c0_i32_0 = arith.constant 0 : i32
    return %c0_i32 : i32
  }
  func.func @transform_5(%arg0: i32, %arg1: memref<4xi32, #tpu.memory_space<smem>>) -> (i32, i32) {
    %c0_i32 = arith.constant 0 : i32
    %c0_i32_0 = arith.constant 0 : i32
    %c0_i32_1 = arith.constant 0 : i32
    return %c0_i32, %c0_i32_0 : i32, i32
  }
  func.func @transform_6(%arg0: i32, %arg1: memref<4xi32, #tpu.memory_space<smem>>) -> (i32, i32) {
    %c0_i32 = arith.constant 0 : i32
    %c0_i32_0 = arith.constant 0 : i32
    %c0_i32_1 = arith.constant 0 : i32
    return %c0_i32, %c0_i32_0 : i32, i32
  }
  func.func @transform_7(%arg0: i32, %arg1: memref<4xi32, #tpu.memory_space<smem>>) -> (i32, i32, i32) {
    %c0_i32 = arith.constant 0 : i32
    %c0_i32_0 = arith.constant 0 : i32
    %c0_i32_1 = arith.constant 0 : i32
    return %arg0, %c0_i32, %c0_i32_0 : i32, i32, i32
  }
}

module attributes {stable_mosaic.version = 11 : i64} {
  func.func @_head_kernel(%arg0: i32, %arg1: memref<4xi32, #tpu.memory_space<smem>>, %arg2: memref<2x8x128xbf16, #tpu.memory_space<vmem>>, %arg3: memref<128x128xbf16, #tpu.memory_space<vmem>>, %arg4: memref<1x128xf32, #tpu.memory_space<vmem>>, %arg5: memref<1x128xf32, #tpu.memory_space<vmem>>, %arg6: memref<1xf32, #tpu.memory_space<smem>>, %arg7: memref<128x128xbf16, #tpu.memory_space<vmem>>, %arg8: memref<1x128xf32, #tpu.memory_space<vmem>>, %arg9: memref<2x1x128xf32, #tpu.memory_space<vmem>>) attributes {dimension_semantics = [#tpu.dimension_semantics<parallel>], iteration_bounds = array<i64: 2>, scalar_prefetch = 1 : i64, scratch_operands = 0 : i64, tpu.core_type = #tpu.core_type<tc>, window_params = [{transform_indices = @transform_0, window_bounds = array<i64: 2, 8, 128>}, {pipeline_mode = #tpu.pipeline_mode<synchronous>, transform_indices = @transform_1, window_bounds = array<i64: 128, 128>}, {pipeline_mode = #tpu.pipeline_mode<synchronous>, transform_indices = @transform_2, window_bounds = array<i64: 1, 128>}, {pipeline_mode = #tpu.pipeline_mode<synchronous>, transform_indices = @transform_3, window_bounds = array<i64: 1, 128>}, {transform_indices = @transform_4, window_bounds = array<i64: 1>}, {pipeline_mode = #tpu.pipeline_mode<synchronous>, transform_indices = @transform_5, window_bounds = array<i64: 128, 128>}, {pipeline_mode = #tpu.pipeline_mode<synchronous>, transform_indices = @transform_6, window_bounds = array<i64: 1, 128>}, {transform_indices = @transform_7, window_bounds = array<i64: 2, 1, 128>}]} {
    %c0 = arith.constant 0 : index
    %c0_0 = arith.constant 0 : index
    %c0_1 = arith.constant 0 : index
    %0 = vector.load %arg2[%c0, %c0_0, %c0_1] : memref<2x8x128xbf16, #tpu.memory_space<vmem>>, vector<2x8x128xbf16>
    %1 = vector.shape_cast %0 : vector<2x8x128xbf16> to vector<16x128xbf16>
    %c0_2 = arith.constant 0 : index
    %c0_3 = arith.constant 0 : index
    %2 = vector.load %arg3[%c0_2, %c0_3] : memref<128x128xbf16, #tpu.memory_space<vmem>>, vector<128x128xbf16>
    %cst = arith.constant dense<0.000000e+00> : vector<16x128xf32>
    %3 = tpu.matmul %1, %2, %cst {dimension_numbers = #tpu.dot_dimension_numbers<[1], [0], [0], [1], [0, 0, 1, 1], [], []>} : vector<16x128xbf16>, vector<128x128xbf16>, vector<16x128xf32> -> vector<16x128xf32>
    %c0_4 = arith.constant 0 : index
    %c0_5 = arith.constant 0 : index
    %4 = vector.load %arg4[%c0_4, %c0_5] : memref<1x128xf32, #tpu.memory_space<vmem>>, vector<1x128xf32>
    %5 = vector.broadcast %4 : vector<1x128xf32> to vector<16x128xf32>
    %6 = arith.addf %3, %5 : vector<16x128xf32>
    %7 = math.tanh %6 : vector<16x128xf32>
    %8 = vector.shape_cast %7 : vector<16x128xf32> to vector<2x8x128xf32>
    %c0_6 = arith.constant 0 : index
    %c0_7 = arith.constant 0 : index
    %9 = vector.load %arg5[%c0_6, %c0_7] : memref<1x128xf32, #tpu.memory_space<vmem>>, vector<1x128xf32>
    %10 = vector.shape_cast %9 : vector<1x128xf32> to vector<1x1x128xf32>
    %11 = vector.broadcast %10 : vector<1x1x128xf32> to vector<2x8x128xf32>
    %12 = arith.mulf %8, %11 : vector<2x8x128xf32>
    %cst_8 = arith.constant dense<0.000000e+00> : vector<2x8xf32>
    %13 = vector.multi_reduction <add>, %12, %cst_8 [2] : vector<2x8x128xf32> to vector<2x8xf32>
    %c0_9 = arith.constant 0 : index
    %14 = memref.load %arg6[%c0_9] : memref<1xf32, #tpu.memory_space<smem>>
    %15 = vector.broadcast %14 : f32 to vector<2x8xf32>
    %16 = arith.addf %13, %15 : vector<2x8xf32>
    %c2_i32 = arith.constant 2 : i32
    %17 = arith.muli %arg0, %c2_i32 : i32
    %18 = tpu.iota {dimensions = array<i32: 1>} : vector<2x8xi32>
    %19 = tpu.iota {dimensions = array<i32: 0>} : vector<2x8xi32>
    %c0_i32 = arith.constant 0 : i32
    %20 = vector.broadcast %c0_i32 : i32 to vector<2x8xi32>
    %c0_i32_10 = arith.constant 0 : i32
    %21 = vector.broadcast %c0_i32_10 : i32 to vector<2x8xi32>
    %22 = arith.cmpi eq, %19, %21 : vector<2x8xi32>
    %c0_i32_11 = arith.constant 0 : i32
    %23 = arith.addi %17, %c0_i32_11 : i32
    %24 = arith.index_cast %23 : i32 to index
    %25 = memref.load %arg1[%24] : memref<4xi32, #tpu.memory_space<smem>>
    %26 = vector.broadcast %25 : i32 to vector<2x8xi32>
    %27 = arith.select %22, %26, %20 : vector<2x8xi1>, vector<2x8xi32>
    %c1_i32 = arith.constant 1 : i32
    %28 = vector.broadcast %c1_i32 : i32 to vector<2x8xi32>
    %29 = arith.cmpi eq, %19, %28 : vector<2x8xi32>
    %c1_i32_12 = arith.constant 1 : i32
    %30 = arith.addi %17, %c1_i32_12 : i32
    %31 = arith.index_cast %30 : i32 to index
    %32 = memref.load %arg1[%31] : memref<4xi32, #tpu.memory_space<smem>>
    %33 = vector.broadcast %32 : i32 to vector<2x8xi32>
    %34 = arith.select %29, %33, %27 : vector<2x8xi1>, vector<2x8xi32>
    %35 = arith.cmpi slt, %18, %34 : vector<2x8xi32>
    %cst_13 = arith.constant -1.000000e+20 : f32
    %36 = vector.broadcast %cst_13 : f32 to vector<2x8xf32>
    %37 = arith.select %35, %16, %36 : vector<2x8xi1>, vector<2x8xf32>
    %cst_14 = arith.constant dense<0xFF800000> : vector<2xf32>
    %38 = vector.multi_reduction <maximumf>, %37, %cst_14 [1] : vector<2x8xf32> to vector<2xf32>
    %39 = vector.shape_cast %38 : vector<2xf32> to vector<2x1xf32>
    %40 = vector.broadcast %39 : vector<2x1xf32> to vector<2x8xf32>
    %41 = arith.subf %37, %40 : vector<2x8xf32>
    %42 = math.exp %41 : vector<2x8xf32>
    %cst_15 = arith.constant dense<0.000000e+00> : vector<2xf32>
    %43 = vector.multi_reduction <add>, %42, %cst_15 [1] : vector<2x8xf32> to vector<2xf32>
    %44 = vector.shape_cast %43 : vector<2xf32> to vector<2x1xf32>
    %45 = tpu.reciprocal %44 {approx = true} : vector<2x1xf32> -> vector<2x1xf32>
    %46 = vector.broadcast %45 : vector<2x1xf32> to vector<2x8xf32>
    %47 = arith.mulf %42, %46 : vector<2x8xf32>
    %48 = vector.shape_cast %47 : vector<2x8xf32> to vector<2x8x1xf32>
    %49 = vector.broadcast %48 : vector<2x8x1xf32> to vector<2x8x128xf32>
    %50 = arith.mulf %8, %49 : vector<2x8x128xf32>
    %cst_16 = arith.constant dense<0.000000e+00> : vector<2x128xf32>
    %51 = vector.multi_reduction <add>, %50, %cst_16 [1] : vector<2x8x128xf32> to vector<2x128xf32>
    %52 = arith.truncf %51 : vector<2x128xf32> to vector<2x128xbf16>
    %c0_17 = arith.constant 0 : index
    %c0_18 = arith.constant 0 : index
    %53 = vector.load %arg7[%c0_17, %c0_18] : memref<128x128xbf16, #tpu.memory_space<vmem>>, vector<128x128xbf16>
    %cst_19 = arith.constant dense<0.000000e+00> : vector<2x128xf32>
    %54 = tpu.matmul %52, %53, %cst_19 {dimension_numbers = #tpu.dot_dimension_numbers<[1], [0], [0], [1], [0, 0, 1, 1], [], []>} : vector<2x128xbf16>, vector<128x128xbf16>, vector<2x128xf32> -> vector<2x128xf32>
    %c0_20 = arith.constant 0 : index
    %c0_21 = arith.constant 0 : index
    %55 = vector.load %arg8[%c0_20, %c0_21] : memref<1x128xf32, #tpu.memory_space<vmem>>, vector<1x128xf32>
    %56 = vector.broadcast %55 : vector<1x128xf32> to vector<2x128xf32>
    %57 = arith.addf %54, %56 : vector<2x128xf32>
    %58 = vector.shape_cast %57 : vector<2x128xf32> to vector<2x1x128xf32>
    %c0_22 = arith.constant 0 : index
    %c0_23 = arith.constant 0 : index
    %c0_24 = arith.constant 0 : index
    %59 = vector.load %arg9[%c0_22, %c0_23, %c0_24] : memref<2x1x128xf32, #tpu.memory_space<vmem>>, vector<2x1x128xf32>
    tpu.vector_store %arg9[%c0_22, %c0_23, %c0_24], %58 {strides = array<i32>} : memref<2x1x128xf32, #tpu.memory_space<vmem>>, vector<2x1x128xf32>,
    return
  }
  func.func @transform_0(%arg0: i32, %arg1: memref<4xi32, #tpu.memory_space<smem>>) -> (i32, i32, i32) {
    %c0_i32 = arith.constant 0 : i32
    %c0_i32_0 = arith.constant 0 : i32
    %c0_i32_1 = arith.constant 0 : i32
    return %arg0, %c0_i32, %c0_i32_0 : i32, i32, i32
  }
  func.func @transform_1(%arg0: i32, %arg1: memref<4xi32, #tpu.memory_space<smem>>) -> (i32, i32) {
    %c0_i32 = arith.constant 0 : i32
    %c0_i32_0 = arith.constant 0 : i32
    %c0_i32_1 = arith.constant 0 : i32
    return %c0_i32, %c0_i32_0 : i32, i32
  }
  func.func @transform_2(%arg0: i32, %arg1: memref<4xi32, #tpu.memory_space<smem>>) -> (i32, i32) {
    %c0_i32 = arith.constant 0 : i32
    %c0_i32_0 = arith.constant 0 : i32
    %c0_i32_1 = arith.constant 0 : i32
    return %c0_i32, %c0_i32_0 : i32, i32
  }
  func.func @transform_3(%arg0: i32, %arg1: memref<4xi32, #tpu.memory_space<smem>>) -> (i32, i32) {
    %c0_i32 = arith.constant 0 : i32
    %c0_i32_0 = arith.constant 0 : i32
    %c0_i32_1 = arith.constant 0 : i32
    return %c0_i32, %c0_i32_0 : i32, i32
  }
  func.func @transform_4(%arg0: i32, %arg1: memref<4xi32, #tpu.memory_space<smem>>) -> i32 {
    %c0_i32 = arith.constant 0 : i32
    %c0_i32_0 = arith.constant 0 : i32
    return %c0_i32 : i32
  }
  func.func @transform_5(%arg0: i32, %arg1: memref<4xi32, #tpu.memory_space<smem>>) -> (i32, i32) {
    %c0_i32 = arith.constant 0 : i32
    %c0_i32_0 = arith.constant 0 : i32
    %c0_i32_1 = arith.constant 0 : i32
    return %c0_i32, %c0_i32_0 : i32, i32
  }
  func.func @transform_6(%arg0: i32, %arg1: memref<4xi32, #tpu.memory_space<smem>>) -> (i32, i32) {
    %c0_i32 = arith.constant 0 : i32
    %c0_i32_0 = arith.constant 0 : i32
    %c0_i32_1 = arith.constant 0 : i32
    return %c0_i32, %c0_i32_0 : i32, i32
  }
  func.func @transform_7(%arg0: i32, %arg1: memref<4xi32, #tpu.memory_space<smem>>) -> (i32, i32, i32) {
    %c0_i32 = arith.constant 0 : i32
    %c0_i32_0 = arith.constant 0 : i32
    %c0_i32_1 = arith.constant 0 : i32
    return %arg0, %c0_i32, %c0_i32_0 : i32, i32, i32
  }
}

</mosaic_0001>

<llo_original>
// kernel: tpu_custom_call.1
$region0: #{tpu_custom_call.1}
  #allocation0 [shape = 'u32[]', space=smem, size = 0x4, offset = 0x4, fixed_abs, tag = 'smem constant byte address 0x4 - core index']
  #allocation1 [shape = 'u32[144,128]{1,0:T(1,128)}', space=vmem, size = 0x12000, scoped, tag = 'internal scratch']
  #allocation2 [shape = 's32[1]{0}', space=sflag, size = 0x4, scoped, tag = 'scoped memory for tpu_custom_call.1']
  #allocation3 [shape = 'u8[512]{0}', space=smem, size = 0x200, scoped, tag = 'prefetched SMEM operand 0']
  #allocation4 [shape = 'f32[1]{0:T(128)S(6)}', space=smem, size = 0x200, scoped, tag = 'scoped memory for tpu_custom_call.1']
  %s0 = inlined_call_operand.vmem [shape: s32[4], index: 0, kind: input, shape index: {}]
  %s1 = inlined_call_operand.hbm [shape: bf16[4,8,128], index: 1, kind: input, shape index: {}]
  %s2 = inlined_call_operand.hbm [shape: bf16[128,128], index: 2, kind: input, shape index: {}]
  %s3 = inlined_call_operand.vmem [shape: f32[1,128], index: 3, kind: input, shape index: {}]
  %s4 = inlined_call_operand.vmem [shape: f32[1,128], index: 4, kind: input, shape index: {}]
  %s5 = inlined_call_operand.<no memory space> [shape: f32[1], index: 5, kind: input, shape index: {}]
  %s6 = inlined_call_operand.hbm [shape: bf16[128,128], index: 6, kind: input, shape index: {}]
  %s7 = inlined_call_operand.vmem [shape: f32[1,128], index: 7, kind: input, shape index: {}]
  %s8 = inlined_call_operand.hbm [shape: f32[4,1,128], index: 8, kind: output, shape index: {}]
  %s9 = sld [smem:[#allocation0]]
  $region73: #{tpu_custom_call.1} parent=0
    _
  %s11 = ssub.s32 1, %s9
  %s12 = scalar_select 0, %s11, %s9
  %s13 = sshll.u32 %s0, 4
  %s14 = int_to_ptr.vmem [resolvable:$true] %s13
  %16 = dma.vmem_to_smem %s14, 16, [#allocation3], [#allocation2]
  %17 = sst [smem:[#allocation4]] %s5
  %18 = dma.done [#allocation2], 16
  %19 = sfence
  $region1: #{tpu_custom_call.1} parent=0
    #allocation5 [shape = 'u8[8192]{0}', space=vmem, size = 0x2000, scoped, tag = 'input window, operand 1']
    #allocation6 [shape = 's32[2]{0}', space=sflag, size = 0x8, scoped, tag = 'scoped memory for tpu_custom_call.1']
    #allocation7 [shape = 's32[2]{0}', space=sflag, size = 0x8, scoped, tag = 'scoped memory for tpu_custom_call.1']
    #allocation8 [shape = 'u8[32768]{0}', space=vmem, size = 0x8000, scoped, tag = 'input window, operand 2, single buffered']
    #allocation9 [shape = 's32[1]{0}', space=sflag, size = 0x4, scoped, tag = 'scoped memory for tpu_custom_call.1']
    #allocation10 [shape = 'u8[32768]{0}', space=vmem, size = 0x8000, scoped, tag = 'input window, operand 6, single buffered']
    #allocation11 [shape = 'u8[2048]{0}', space=vmem, size = 0x800, scoped, tag = 'output window, operand 0']
    %20 = vsyncpa [#allocation6], 0
    %s21 = scalar_lea.sflag [#allocation6], 1
    %22 = vsyncpa %s21, 0
    %23 = vsyncpa [#allocation9], 0
    %24 = vsyncpa [#allocation7], 0
    %s25 = scalar_lea.sflag [#allocation7], 1
    %26 = vsyncpa %s25, 0
    loop: start=0, step=1, limit=4
    $region2: #{tpu_custom_call.1} parent=1 // loop_pre_header
      _
    $region3: #{tpu_custom_call.1} parent=1 // loop_header
      %s28 = sphi 0, %s32
      %p29 = scmp.ge.s32.totalorder %s28, 4
      %s38 = sphi 0, %s40
      %s41 = sphi 0, %s38
      %s42 = sphi 0, %s41
      %s58 = sphi 0, %s42
      %s62 = sphi 0, %s62
      %s64 = sphi 0, %s62
      %s65 = sphi 0, %s64
      %s79 = sphi 0, %s65
      %s83 = sphi 0, %s83
      %s85 = sphi 0, %s83
      %s86 = sphi 0, %s85
      %s100 = sphi 0, %s86
      %s104 = sphi 0, %s104
      %s106 = sphi 0, %s104
      %s107 = sphi 0, %s106
      %s121 = sphi 0, %s107
      %s125 = sphi 0, %s125
      %s127 = sphi 0, %s125
      %s128 = sphi 0, %s127
      %s142 = sphi 0, %s128
      %s146 = sphi 0, %s146
      %s148 = sphi 0, %s146
      %s149 = sphi 0, %s148
      %s163 = sphi 0, %s149
      %s167 = sphi 0, %s167
      %s169 = sphi 0, %s167
      %s170 = sphi 0, %s169
      %s184 = sphi 0, %s170
      %s190 = sphi 0, %s192
      %s193 = sphi 0, %s190
      %s194 = sphi 0, %s193
      %s210 = sphi 0, %s194
    $region4: #{tpu_custom_call.1} parent=1 // loop_header_branch
      %31 = sbr.rel (%p29) target = $region8
    $region5: #{tpu_custom_call.1} parent=1 // loop_body
      %s33 = ssub.s32 %s28, 1
      %s34 = ssub.s32 %s28, 2
      %s35 = sadd.s32 %s28, 1
      %s36 = ssub.s32 %s28, %s35
      %p37 = scmp.eq.s32.totalorder %s36, 0
      %s39 = sadd.s32 %s38, 1
      %s40 = scalar_select %p37, %s38, %s39
      %p43 = pneg %p37
      %p44 = scmp.eq.s32.totalorder %s28, 1
      %p45 = por %p43, %p44
      %p46 = scmp.ne.s32.totalorder %s38, %s41
      %p47 = scmp.eq.s32.totalorder %s28, 0
      %p48 = por %p46, %p47
      %p49 = scmp.ne.s32.totalorder %s38, %s41
      %p50 = scmp.eq.s32.totalorder %s33, 1
      %p51 = por %p49, %p50
      %p52 = scmp.ne.s32.totalorder %s41, %s42
      %p53 = scmp.eq.s32.totalorder %s33, 0
      %p54 = por %p52, %p53
      %p55 = scmp.ne.s32.totalorder %s41, %s42
      %p56 = scmp.eq.s32.totalorder %s34, 1
      %p57 = por %p55, %p56
      %p59 = scmp.ne.s32.totalorder %s42, %s58
      %p60 = scmp.eq.s32.totalorder %s34, 0
      %p61 = por %p59, %p60
      %s63 = sadd.s32 %s62, 1
      %p66 = scmp.eq.s32.totalorder %s28, 1
      %p67 = scmp.ne.s32.totalorder %s62, %s64
      %p68 = scmp.eq.s32.totalorder %s28, 0
      %p69 = por %p67, %p68
      %p70 = scmp.ne.s32.totalorder %s62, %s64
      %p71 = scmp.eq.s32.totalorder %s33, 1
      %p72 = por %p70, %p71
      %p73 = scmp.ne.s32.totalorder %s64, %s65
      %p74 = scmp.eq.s32.totalorder %s33, 0
      %p75 = por %p73, %p74
      %p76 = scmp.ne.s32.totalorder %s64, %s65
      %p77 = scmp.eq.s32.totalorder %s34, 1
      %p78 = por %p76, %p77
      %p80 = scmp.ne.s32.totalorder %s65, %s79
      %p81 = scmp.eq.s32.totalorder %s34, 0
      %p82 = por %p80, %p81
      %s84 = sadd.s32 %s83, 1
      %p87 = scmp.eq.s32.totalorder %s28, 1
      %p88 = scmp.ne.s32.totalorder %s83, %s85
      %p89 = scmp.eq.s32.totalorder %s28, 0
      %p90 = por %p88, %p89
      %p91 = scmp.ne.s32.totalorder %s83, %s85
      %p92 = scmp.eq.s32.totalorder %s33, 1
      %p93 = por %p91, %p92
      %p94 = scmp.ne.s32.totalorder %s85, %s86
      %p95 = scmp.eq.s32.totalorder %s33, 0
      %p96 = por %p94, %p95
      %p97 = scmp.ne.s32.totalorder %s85, %s86
      %p98 = scmp.eq.s32.totalorder %s34, 1
      %p99 = por %p97, %p98
      %p101 = scmp.ne.s32.totalorder %s86, %s100
      %p102 = scmp.eq.s32.totalorder %s34, 0
      %p103 = por %p101, %p102
      %s105 = sadd.s32 %s104, 1
      %p108 = scmp.eq.s32.totalorder %s28, 1
      %p109 = scmp.ne.s32.totalorder %s104, %s106
      %p110 = scmp.eq.s32.totalorder %s28, 0
      %p111 = por %p109, %p110
      %p112 = scmp.ne.s32.totalorder %s104, %s106
      %p113 = scmp.eq.s32.totalorder %s33, 1
      %p114 = por %p112, %p113
      %p115 = scmp.ne.s32.totalorder %s106, %s107
      %p116 = scmp.eq.s32.totalorder %s33, 0
      %p117 = por %p115, %p116
      %p118 = scmp.ne.s32.totalorder %s106, %s107
      %p119 = scmp.eq.s32.totalorder %s34, 1
      %p120 = por %p118, %p119
      %p122 = scmp.ne.s32.totalorder %s107, %s121
      %p123 = scmp.eq.s32.totalorder %s34, 0
      %p124 = por %p122, %p123
      %s126 = sadd.s32 %s125, 1
      %p129 = scmp.eq.s32.totalorder %s28, 1
      %p130 = scmp.ne.s32.totalorder %s125, %s127
      %p131 = scmp.eq.s32.totalorder %s28, 0
      %p132 = por %p130, %p131
      %p133 = scmp.ne.s32.totalorder %s125, %s127
      %p134 = scmp.eq.s32.totalorder %s33, 1
      %p135 = por %p133, %p134
      %p136 = scmp.ne.s32.totalorder %s127, %s128
      %p137 = scmp.eq.s32.totalorder %s33, 0
      %p138 = por %p136, %p137
      %p139 = scmp.ne.s32.totalorder %s127, %s128
      %p140 = scmp.eq.s32.totalorder %s34, 1
      %p141 = por %p139, %p140
      %p143 = scmp.ne.s32.totalorder %s128, %s142
      %p144 = scmp.eq.s32.totalorder %s34, 0
      %p145 = por %p143, %p144
      %s147 = sadd.s32 %s146, 1
      %p150 = scmp.eq.s32.totalorder %s28, 1
      %p151 = scmp.ne.s32.totalorder %s146, %s148
      %p152 = scmp.eq.s32.totalorder %s28, 0
      %p153 = por %p151, %p152
      %p154 = scmp.ne.s32.totalorder %s146, %s148
      %p155 = scmp.eq.s32.totalorder %s33, 1
      %p156 = por %p154, %p155
      %p157 = scmp.ne.s32.totalorder %s148, %s149
      %p158 = scmp.eq.s32.totalorder %s33, 0
      %p159 = por %p157, %p158
      %p160 = scmp.ne.s32.totalorder %s148, %s149
      %p161 = scmp.eq.s32.totalorder %s34, 1
      %p162 = por %p160, %p161
      %p164 = scmp.ne.s32.totalorder %s149, %s163
      %p165 = scmp.eq.s32.totalorder %s34, 0
      %p166 = por %p164, %p165
      %s168 = sadd.s32 %s167, 1
      %p171 = scmp.eq.s32.totalorder %s28, 1
      %p172 = scmp.ne.s32.totalorder %s167, %s169
      %p173 = scmp.eq.s32.totalorder %s28, 0
      %p174 = por %p172, %p173
      %p175 = scmp.ne.s32.totalorder %s167, %s169
      %p176 = scmp.eq.s32.totalorder %s33, 1
      %p177 = por %p175, %p176
      %p178 = scmp.ne.s32.totalorder %s169, %s170
      %p179 = scmp.eq.s32.totalorder %s33, 0
      %p180 = por %p178, %p179
      %p181 = scmp.ne.s32.totalorder %s169, %s170
      %p182 = scmp.eq.s32.totalorder %s34, 1
      %p183 = por %p181, %p182
      %p185 = scmp.ne.s32.totalorder %s170, %s184
      %p186 = scmp.eq.s32.totalorder %s34, 0
      %p187 = por %p185, %p186
      %s188 = ssub.s32 %s28, %s35
      %p189 = scmp.eq.s32.totalorder %s188, 0
      %s191 = sadd.s32 %s190, 1
      %s192 = scalar_select %p189, %s190, %s191
      %p195 = pneg %p189
      %p196 = scmp.eq.s32.totalorder %s28, 1
      %p197 = por %p195, %p196
      %p198 = scmp.ne.s32.totalorder %s190, %s193
      %p199 = scmp.eq.s32.totalorder %s28, 0
      %p200 = por %p198, %p199
      %p201 = scmp.ne.s32.totalorder %s190, %s193
      %p202 = scmp.eq.s32.totalorder %s33, 1
      %p203 = por %p201, %p202
      %p204 = scmp.ne.s32.totalorder %s193, %s194
      %p205 = scmp.eq.s32.totalorder %s33, 0
      %p206 = por %p204, %p205
      %p207 = scmp.ne.s32.totalorder %s193, %s194
      %p208 = scmp.eq.s32.totalorder %s34, 1
      %p209 = por %p207, %p208
      %p211 = scmp.ne.s32.totalorder %s194, %s210
      %p212 = scmp.eq.s32.totalorder %s34, 0
      %p213 = por %p211, %p212
      %p214 = scmp.le.s32.totalorder 1, %s28
      %p215 = scmp.lt.s32.totalorder %s28, 3
      %p216 = pnand %p214, %p215
      %p217 = pneg %p216
      // Predicated region
      $region9: #{tpu_custom_call.1} parent=5 // pred_check
        _
      $region10: #{tpu_custom_call.1} parent=5 // pred_check_branch
        %219 = sbr.rel (%p216) target = $region12
      $region11: #{tpu_custom_call.1} parent=5 // pred_region
        %s220 = ssub.s32 %s28, 1
        // Predicated region
        $region13: #{tpu_custom_call.1} parent=11 // pred_check
          %p221 = pneg %p75
        $region14: #{tpu_custom_call.1} parent=11 // pred_check_branch
          %223 = sbr.rel (%p221) target = $region16
        $region15: #{tpu_custom_call.1} parent=11 // pred_region
          %s225 = ssub.s32 1024, 1024
          %226 = vsyncadd [#allocation9], %s225
          %s227 = sshll.u32 [#allocation8], 4
          %s228 = int_to_ptr.vmem [resolvable:$true] %s227
          %233 = dma.hbm_to_vmem [thread:$0]  %s2, 1024, %s228, [#allocation9], 64, 64, 4
        $region16: #{tpu_custom_call.1} parent=11 // pred_fallthru
          _
        // Predicated region
        $region17: #{tpu_custom_call.1} parent=11 // pred_check
          %p234 = pneg %p96
        $region18: #{tpu_custom_call.1} parent=11 // pred_check_branch
          %236 = sbr.rel (%p234) target = $region20
        $region19: #{tpu_custom_call.1} parent=11 // pred_region
          _
        $region20: #{tpu_custom_call.1} parent=11 // pred_fallthru
          _
        // Predicated region
        $region21: #{tpu_custom_call.1} parent=11 // pred_check
          %p237 = pneg %p117
        $region22: #{tpu_custom_call.1} parent=11 // pred_check_branch
          %239 = sbr.rel (%p237) target = $region24
        $region23: #{tpu_custom_call.1} parent=11 // pred_region
          _
        $region24: #{tpu_custom_call.1} parent=11 // pred_fallthru
          _
        // Predicated region
        $region25: #{tpu_custom_call.1} parent=11 // pred_check
          %p240 = pneg %p138
        $region26: #{tpu_custom_call.1} parent=11 // pred_check_branch
          %242 = sbr.rel (%p240) target = $region28
        $region27: #{tpu_custom_call.1} parent=11 // pred_region
          _
        $region28: #{tpu_custom_call.1} parent=11 // pred_fallthru
          _
        // Predicated region
        $region29: #{tpu_custom_call.1} parent=11 // pred_check
          %p243 = pneg %p159
        $region30: #{tpu_custom_call.1} parent=11 // pred_check_branch
          %245 = sbr.rel (%p243) target = $region32
        $region31: #{tpu_custom_call.1} parent=11 // pred_region
          %s247 = ssub.s32 1024, 1024
          %248 = vsyncadd [#allocation9], %s247
          %s249 = sshll.u32 [#allocation10], 4
          %s250 = int_to_ptr.vmem [resolvable:$true] %s249
          %255 = dma.hbm_to_vmem [thread:$0]  %s6, 1024, %s250, [#allocation9], 64, 64, 4
        $region32: #{tpu_custom_call.1} parent=11 // pred_fallthru
          _
        // Predicated region
        $region33: #{tpu_custom_call.1} parent=11 // pred_check
          %p256 = pneg %p180
        $region34: #{tpu_custom_call.1} parent=11 // pred_check_branch
          %258 = sbr.rel (%p256) target = $region36
        $region35: #{tpu_custom_call.1} parent=11 // pred_region
          _
        $region36: #{tpu_custom_call.1} parent=11 // pred_fallthru
          _
      $region12: #{tpu_custom_call.1} parent=5 // pred_fallthru
        _
      %p259 = scmp.lt.s32.totalorder %s28, 2
      // Predicated region
      $region37: #{tpu_custom_call.1} parent=5 // pred_check
        %p260 = pneg %p259
      $region38: #{tpu_custom_call.1} parent=5 // pred_check_branch
        %262 = sbr.rel (%p260) target = $region40
      $region39: #{tpu_custom_call.1} parent=5 // pred_region
        // Predicated region
        $region41: #{tpu_custom_call.1} parent=39 // pred_check
          %p263 = pneg %p48
        $region42: #{tpu_custom_call.1} parent=39 // pred_check_branch
          %265 = sbr.rel (%p263) target = $region44
        $region43: #{tpu_custom_call.1} parent=39 // pred_region
          %s266 = sand.u32 %s38, 1
          %s267 = scalar_lea.sflag [#allocation6], %s266
          %s268 = sand.u32 %s38, 1
          %s269 = smul.addr %s268, 8
          %s270 = scalar_lea.vmem [#allocation5], %s269
          %s271 = smul.u32 2, %s28
          %s273 = ssub.s32 128, 128
          %274 = vsyncadd %s267, %s273
          %s275 = smul.addr %s271, 64
          %s276 = scalar_lea.hbm %s1, %s275
          %s277 = sshll.u32 %s270, 4
          %s278 = int_to_ptr.vmem [resolvable:$true] %s277
          %283 = dma.hbm_to_vmem [thread:$0]  %s276, 128, %s278, %s267, 64, 64, 4
        $region44: #{tpu_custom_call.1} parent=39 // pred_fallthru
          _
      $region40: #{tpu_custom_call.1} parent=5 // pred_fallthru
        _
      %p284 = scmp.le.s32.totalorder 1, %s28
      %p285 = scmp.lt.s32.totalorder %s28, 3
      %p286 = pnand %p284, %p285
      %p287 = pneg %p286
      // Predicated region
      $region45: #{tpu_custom_call.1} parent=5 // pred_check
        _
      $region46: #{tpu_custom_call.1} parent=5 // pred_check_branch
        %289 = sbr.rel (%p286) target = $region48
      $region47: #{tpu_custom_call.1} parent=5 // pred_region
        %s290 = ssub.s32 %s28, 1
        %s291 = sand.u32 %s41, 1
        %s292 = scalar_lea.sflag [#allocation6], %s291
        %s293 = sand.u32 %s41, 1
        %s294 = smul.addr %s293, 8
        %s295 = scalar_lea.vmem [#allocation5], %s294
        // Predicated region
        $region49: #{tpu_custom_call.1} parent=47 // pred_check
          %p296 = pneg %p54
        $region50: #{tpu_custom_call.1} parent=47 // pred_check_branch
          %298 = sbr.rel (%p296) target = $region52
        $region51: #{tpu_custom_call.1} parent=47 // pred_region
          %299 = dma.done %s292, 128
        $region52: #{tpu_custom_call.1} parent=47 // pred_fallthru
          _
        // Predicated region
        $region53: #{tpu_custom_call.1} parent=47 // pred_check
          %p300 = pneg %p75
        $region54: #{tpu_custom_call.1} parent=47 // pred_check_branch
          %302 = sbr.rel (%p300) target = $region56
        $region55: #{tpu_custom_call.1} parent=47 // pred_region
          %303 = dma.done [#allocation9], 1024
        $region56: #{tpu_custom_call.1} parent=47 // pred_fallthru
          _
        // Predicated region
        $region57: #{tpu_custom_call.1} parent=47 // pred_check
          %p304 = pneg %p159
        $region58: #{tpu_custom_call.1} parent=47 // pred_check_branch
          %306 = sbr.rel (%p304) target = $region60
        $region59: #{tpu_custom_call.1} parent=47 // pred_region
          %307 = dma.done [#allocation9], 1024
        $region60: #{tpu_custom_call.1} parent=47 // pred_fallthru
          _
        %s308 = sand.u32 %s41, 1
        %s309 = scalar_lea.sflag [#allocation6], %s308
        %s310 = sand.u32 %s41, 1
        %s311 = smul.addr %s310, 8
        %s312 = scalar_lea.vmem [#allocation5], %s311
        %p313 = pneg %p54
        %p314 = pneg %p51
        %p315 = pneg %p75
        %p316 = pneg %p72
        %p317 = pneg %p96
        %p318 = pneg %p93
        %p319 = pneg %p117
        %p320 = pneg %p114
        %p321 = pneg %p138
        %p322 = pneg %p135
        %p323 = pneg %p159
        %p324 = pneg %p156
        %p325 = pneg %p180
        %p326 = pneg %p177
        %p327 = pneg %p206
        %p328 = pneg %p203
        %s329 = sand.u32 %s193, 1
        %s330 = scalar_lea.sflag [#allocation7], %s329
        %s331 = sand.u32 %s193, 1
        %s332 = smul.addr %s331, 2
        %s333 = scalar_lea.vmem [#allocation11], %s332
        %s334 = smul.u32 2, %s33
        %s335 = smul.u32 2, %s33
        %v337 = vld [vmem:[%s295] sm:$0xf]
        %v338 = vld [vmem:[%s295 + $0x4] sm:$0xf]
        %v339 = vld [vmem:[#allocation8] sm:$0xf]
        %v340 = vld [vmem:[#allocation8 + $0x4] sm:$0xf]
        %v341 = vld [vmem:[#allocation8 + $0x8] sm:$0xf]
        %v342 = vld [vmem:[#allocation8 + $0xc] sm:$0xf]
        %v343 = vld [vmem:[#allocation8 + $0x10] sm:$0xf]
        %v344 = vld [vmem:[#allocation8 + $0x14] sm:$0xf]
        %v345 = vld [vmem:[#allocation8 + $0x18] sm:$0xf]
        %v346 = vld [vmem:[#allocation8 + $0x1c] sm:$0xf]
        %v347 = vld [vmem:[#allocation8 + $0x20] sm:$0xf]
        %v348 = vld [vmem:[#allocation8 + $0x24] sm:$0xf]
        %v349 = vld [vmem:[#allocation8 + $0x28] sm:$0xf]
        %v350 = vld [vmem:[#allocation8 + $0x2c] sm:$0xf]
        %v351 = vld [vmem:[#allocation8 + $0x30] sm:$0xf]
        %v352 = vld [vmem:[#allocation8 + $0x34] sm:$0xf]
        %v353 = vld [vmem:[#allocation8 + $0x38] sm:$0xf]
        %v354 = vld [vmem:[#allocation8 + $0x3c] sm:$0xf]
        %v355 = vld [vmem:[%s3] sm:$0x1]
        %v357 = vlaneseq
        %v358 = vshrl.u32 %v357, 7
        %v359 = vsub.s32 0, %v358
        %v360 = vrot.slane %v355, %v359
        %v364 = vunpack.c.l.b16 %v337
        %v365 = vunpack.c.l.b16 %v338
        %v366 = vpack.c.b16 %v365, %v364
        %v384 = vunpack.c.l.b16 %v339
        %v385 = vunpack.c.l.b16 %v340
        %v386 = vunpack.c.l.b16 %v341
        %v387 = vunpack.c.l.b16 %v342
        %v388 = vunpack.c.l.b16 %v343
        %v389 = vunpack.c.l.b16 %v344
        %v390 = vunpack.c.l.b16 %v345
        %v391 = vunpack.c.l.b16 %v346
        %v392 = vunpack.c.l.b16 %v347
        %v393 = vunpack.c.l.b16 %v348
        %v394 = vunpack.c.l.b16 %v349
        %v395 = vunpack.c.l.b16 %v350
        %v396 = vunpack.c.l.b16 %v351
        %v397 = vunpack.c.l.b16 %v352
        %v398 = vunpack.c.l.b16 %v353
        %v399 = vunpack.c.l.b16 %v354
        %v400 = vpack.c.b16 %v385, %v384
        %v401 = vpack.c.b16 %v387, %v386
        %v402 = vpack.c.b16 %v389, %v388
        %v403 = vpack.c.b16 %v391, %v390
        %v404 = vpack.c.b16 %v393, %v392
        %v405 = vpack.c.b16 %v395, %v394
        %v406 = vpack.c.b16 %v397, %v396
        %v407 = vpack.c.b16 %v399, %v398
        %416 = vmatprep.subr.bf16.mxu0 0
        %417 = vmatpush1.bf16.msra.mxu0 %v400
        %418 = vmatprep.subr.bf16.mxu0 0
        %419 = vmatpush1.bf16.msra.mxu0 %v401
        %420 = vmatprep.subr.bf16.mxu0 0
        %421 = vmatpush1.bf16.msra.mxu0 %v402
        %422 = vmatprep.subr.bf16.mxu0 0
        %423 = vmatpush1.bf16.msra.mxu0 %v403
        %424 = vmatprep.subr.bf16.mxu0 0
        %425 = vmatpush1.bf16.msra.mxu0 %v404
        %426 = vmatprep.subr.bf16.mxu0 0
        %427 = vmatpush1.bf16.msra.mxu0 %v405
        %428 = vmatprep.subr.bf16.mxu0 0
        %429 = vmatpush1.bf16.msra.mxu0 %v406
        %430 = vmatprep.subr.bf16.mxu0 0
        %431 = vmatpush1.bf16.msra.mxu0 %v407
        %432 = vmatprep.subr.bf16.mxu0 0
        %433 = vmatpush1.bf16.msra.mxu0 0
        %434 = vmatprep.subr.bf16.mxu0 0
        %435 = vmatpush1.bf16.msra.mxu0 0
        %436 = vmatprep.subr.bf16.mxu0 0
        %437 = vmatpush1.bf16.msra.mxu0 0
        %438 = vmatprep.subr.bf16.mxu0 0
        %439 = vmatpush1.bf16.msra.mxu0 0
        %440 = vmatprep.subr.bf16.mxu0 0
        %441 = vmatpush1.bf16.msra.mxu0 0
        %442 = vmatprep.subr.bf16.mxu0 0
        %443 = vmatpush1.bf16.msra.mxu0 0
        %444 = vmatprep.subr.bf16.mxu0 0
        %445 = vmatpush1.bf16.msra.mxu0 0
        %446 = vmatprep.subr.bf16.mxu0 0
        %447 = vmatpush1.bf16.msra.mxu0 0
        %448 = vmatprep.mubr.bf16.mxu0 0
        %449 = vmatmul.mubr.bf16.gmra.mrb[0].mxu0 %v366
        %v450 = vpop.f32.mrb[0].mxu0
        %v451 = vadd.f32 %v360, %v450
        %v452 = vpop.f32.mrb[0].mxu0
        %v453 = vpop.f32.mrb[0].mxu0
        %v454 = vadd.f32 %v360, %v453
        %v455 = vpop.f32.mrb[0].mxu0
        %456 = vdwg.mxu0
        %v457 = vtanh.pop %v451
        %v458 = vtanh.pop %v454
        %v459 = vld [vmem:[%s4] sm:$0x1]
        %v461 = vlaneseq
        %v462 = vshrl.u32 %v461, 7
        %v463 = vsub.s32 0, %v462
        %v464 = vrot.slane %v459, %v463
        %v466 = vmul.f32 %v457, %v464
        %v467 = vmul.f32 %v458, %v464
        %468 = vadd.xlane.f32.xlu0 %v466
        %v469 = vpop.xlane.xlu0 %468
        %470 = vadd.xlane.f32.xlu0 %v467
        %v471 = vpop.xlane.xlu0 %470
        %s472 = sld [smem:[#allocation4]]
        %v473 = vstv %s472
        %v474 = vadd.f32 %v469, %v473
        %v475 = vadd.f32 %v471, %v473
        %s476 = smul.u32 %s33, 2
        %v477 = vlaneseq
        %v478 = vand.u32 %v477, 127
        %v479 = vlaneseq
        %v480 = vshrl.u32 %v479, 7
        %vm481 = vcmp.eq.s32.totalorder %v480, 0
        %s482 = sld [smem:[#allocation3 + %s476]]
        %v483 = vstv %s482
        %v484 = vsel %vm481, %v483, 0
        %vm485 = vcmp.eq.s32.totalorder %v480, 1
        %s486 = sadd.s32 %s476, 1
        %s487 = sld [smem:[#allocation3 + %s486]]
        %v488 = vstv %s487
        %v489 = vsel %vm485, %v488, %v484
        %vm490 = vcmp.lt.s32.totalorder %v478, %v489
        %v493 = vlaneseq
        %v494 = vshrl.u32 %v493, 7
        %v495 = vsub.s32 %v478, %v494
        %v496 = vrot.slane %v474, %v495
        %v497 = vlaneseq
        %v498 = vshrl.u32 %v497, 7
        %v499 = vsub.s32 %v478, %v498
        %v500 = vrot.slane %v475, %v499
        %vm501 = vcmask 1041409
        %v502 = vsel %vm501, %v500, %v496
        %v504 = vsel %vm490, %v502, -1e+20
        %vm505 = vcmask 58368
        %v506 = vsel %vm505, %v504, -inf
        %507 = vmax.xlane.f32.xlu0 %v506
        %v508 = vpop.xlane.xlu0 %507
        %v509 = vsub.f32 %v504, %v508
        %v510 = vmul.f32 %v509, 1.442695
        %v511 = vpow.pop %v510
        %v512 = vsel %vm505, %v511, 0.0
        %513 = vadd.xlane.f32.xlu0 %v512
        %v514 = vpop.xlane.xlu0 %513
        %v515 = vrcp.pop %v514
        %v516 = vmul.f32 %v511, %v515
        %v517 = vlaneseq
        %v518 = vshrl.u32 %v517, 7
        %v519 = vsub.s32 0, %v518
        %v520 = vrot.slane %v516, %v519
        %522 = vbcast.lane.b32.xlu0 %v520, 256
        %v523 = vpop.permute.xlu0 %522
        %v524 = vlaneseq
        %v525 = vshrl.u32 %v524, 7
        %v526 = vsub.s32 1, %v525
        %v527 = vrot.slane %v516, %v526
        %529 = vbcast.lane.b32.xlu0 %v527, 256
        %v530 = vpop.permute.xlu0 %529
        %v531 = vmul.f32 %v457, %v523
        %v532 = vmul.f32 %v458, %v530
        %v533 = vrot.slane %v531, 4
        %v534 = vadd.f32 %v531, %v533
        %v535 = vrot.slane %v534, 2
        %v536 = vadd.f32 %v534, %v535
        %v537 = vrot.slane %v536, 1
        %v538 = vadd.f32 %v536, %v537
        %v539 = vrot.slane %v532, 4
        %v540 = vadd.f32 %v532, %v539
        %v541 = vrot.slane %v540, 2
        %v542 = vadd.f32 %v540, %v541
        %v543 = vrot.slane %v542, 1
        %v544 = vadd.f32 %v542, %v543
        %v545 = vpack.c.bf16 %v538, %v538
        %v546 = vpack.c.bf16 %v544, %v544
        %v547 = vld [vmem:[#allocation10] sm:$0xf]
        %v548 = vld [vmem:[#allocation10 + $0x4] sm:$0xf]
        %v549 = vld [vmem:[#allocation10 + $0x8] sm:$0xf]
        %v550 = vld [vmem:[#allocation10 + $0xc] sm:$0xf]
        %v551 = vld [vmem:[#allocation10 + $0x10] sm:$0xf]
        %v552 = vld [vmem:[#allocation10 + $0x14] sm:$0xf]
        %v553 = vld [vmem:[#allocation10 + $0x18] sm:$0xf]
        %v554 = vld [vmem:[#allocation10 + $0x1c] sm:$0xf]
        %v555 = vld [vmem:[#allocation10 + $0x20] sm:$0xf]
        %v556 = vld [vmem:[#allocation10 + $0x24] sm:$0xf]
        %v557 = vld [vmem:[#allocation10 + $0x28] sm:$0xf]
        %v558 = vld [vmem:[#allocation10 + $0x2c] sm:$0xf]
        %v559 = vld [vmem:[#allocation10 + $0x30] sm:$0xf]
        %v560 = vld [vmem:[#allocation10 + $0x34] sm:$0xf]
        %v561 = vld [vmem:[#allocation10 + $0x38] sm:$0xf]
        %v562 = vld [vmem:[#allocation10 + $0x3c] sm:$0xf]
        %v563 = vld [vmem:[%s7] sm:$0x1]
        %v565 = vlaneseq
        %v566 = vshrl.u32 %v565, 7
        %v567 = vsub.s32 0, %v566
        %v568 = vrot.slane %v563, %v567
        %v572 = vunpack.c.l.b16 %v545
        %v573 = vunpack.c.l.b16 %v546
        %v574 = vsel %vm501, %v573, %v572
        %v575 = vpack.c.b16 %v574, %v574
        %v593 = vunpack.c.l.b16 %v547
        %v594 = vunpack.c.l.b16 %v548
        %v595 = vunpack.c.l.b16 %v549
        %v596 = vunpack.c.l.b16 %v550
        %v597 = vunpack.c.l.b16 %v551
        %v598 = vunpack.c.l.b16 %v552
        %v599 = vunpack.c.l.b16 %v553
        %v600 = vunpack.c.l.b16 %v554
        %v601 = vunpack.c.l.b16 %v555
        %v602 = vunpack.c.l.b16 %v556
        %v603 = vunpack.c.l.b16 %v557
        %v604 = vunpack.c.l.b16 %v558
        %v605 = vunpack.c.l.b16 %v559
        %v606 = vunpack.c.l.b16 %v560
        %v607 = vunpack.c.l.b16 %v561
        %v608 = vunpack.c.l.b16 %v562
        %v609 = vpack.c.b16 %v594, %v593
        %v610 = vpack.c.b16 %v596, %v595
        %v611 = vpack.c.b16 %v598, %v597
        %v612 = vpack.c.b16 %v600, %v599
        %v613 = vpack.c.b16 %v602, %v601
        %v614 = vpack.c.b16 %v604, %v603
        %v615 = vpack.c.b16 %v606, %v605
        %v616 = vpack.c.b16 %v608, %v607
        %625 = vmatprep.subr.bf16.mxu0 0
        %626 = vmatpush1.bf16.msra.mxu0 %v609
        %627 = vmatprep.subr.bf16.mxu0 0
        %628 = vmatpush1.bf16.msra.mxu0 %v610
        %629 = vmatprep.subr.bf16.mxu0 0
        %630 = vmatpush1.bf16.msra.mxu0 %v611
        %631 = vmatprep.subr.bf16.mxu0 0
        %632 = vmatpush1.bf16.msra.mxu0 %v612
        %633 = vmatprep.subr.bf16.mxu0 0
        %634 = vmatpush1.bf16.msra.mxu0 %v613
        %635 = vmatprep.subr.bf16.mxu0 0
        %636 = vmatpush1.bf16.msra.mxu0 %v614
        %637 = vmatprep.subr.bf16.mxu0 0
        %638 = vmatpush1.bf16.msra.mxu0 %v615
        %639 = vmatprep.subr.bf16.mxu0 0
        %640 = vmatpush1.bf16.msra.mxu0 %v616
        %641 = vmatprep.subr.bf16.mxu0 0
        %642 = vmatpush1.bf16.msra.mxu0 0
        %643 = vmatprep.subr.bf16.mxu0 0
        %644 = vmatpush1.bf16.msra.mxu0 0
        %645 = vmatprep.subr.bf16.mxu0 0
        %646 = vmatpush1.bf16.msra.mxu0 0
        %647 = vmatprep.subr.bf16.mxu0 0
        %648 = vmatpush1.bf16.msra.mxu0 0
        %649 = vmatprep.subr.bf16.mxu0 0
        %650 = vmatpush1.bf16.msra.mxu0 0
        %651 = vmatprep.subr.bf16.mxu0 0
        %652 = vmatpush1.bf16.msra.mxu0 0
        %653 = vmatprep.subr.bf16.mxu0 0
        %654 = vmatpush1.bf16.msra.mxu0 0
        %655 = vmatprep.subr.bf16.mxu0 0
        %656 = vmatpush1.bf16.msra.mxu0 0
        %657 = vmatprep.mubr.bf16.mxu0 0
        %658 = vmatmul.mubr.bf16.gmra.mrb[0].mxu0 %v575
        %v659 = vpop.f32.mrb[0].mxu0
        %v660 = vadd.f32 %v568, %v659
        %v661 = vpop.f32.mrb[0].mxu0
        %v662 = vpop.f32.mrb[0].mxu0
        %v663 = vpop.f32.mrb[0].mxu0
        %664 = vdwg.mxu0
        %v667 = vunpack.c.l.s4 1966171168
        %v668 = vunpack.c.0.s8 %v667
        %v669 = vlaneseq
        %v670 = vshrl.u32 %v669, 7
        %v671 = vsub.s32 %v668, %v670
        %v672 = vrot.slane %v660, %v671
        %v673 = vcombine.high %v672, %v672
        %v675 = vunpack.c.l.s4 1966171168
        %v676 = vunpack.c.0.s8 %v675
        %v677 = vlaneseq
        %v678 = vshrl.u32 %v677, 7
        %v679 = vsub.s32 %v676, %v678
        %v680 = vrot.slane %v672, %v679
        %v682 = vunpack.c.l.s4 1966171168
        %v683 = vunpack.c.0.s8 %v682
        %v684 = vlaneseq
        %v685 = vshrl.u32 %v684, 7
        %v686 = vsub.s32 %v683, %v685
        %v687 = vrot.slane %v673, %v686
        %690 = vst [vmem:[%s333] sm:$0x1] %v680
        %691 = vst [vmem:[%s333 + $0x1] sm:$0x1] %v687
        %s692 = sand.u32 %s193, 1
        %s693 = scalar_lea.sflag [#allocation7], %s692
        %s694 = sand.u32 %s193, 1
        %s695 = smul.addr %s694, 2
        %s696 = scalar_lea.vmem [#allocation11], %s695
        // Predicated region
        $region61: #{tpu_custom_call.1} parent=47 // pred_check
          %p697 = pneg %p203
        $region62: #{tpu_custom_call.1} parent=47 // pred_check_branch
          %699 = sbr.rel (%p697) target = $region64
        $region63: #{tpu_custom_call.1} parent=47 // pred_region
          %s700 = smul.u32 2, %s33
          %s702 = ssub.s32 32, 32
          %703 = vsyncadd %s693, %s702
          %s704 = smul.addr %s700, 16
          %s705 = scalar_lea.hbm %s8, %s704
          %s706 = sshll.u32 %s696, 4
          %s707 = int_to_ptr.vmem [resolvable:$true] %s706
          %712 = dma.vmem_to_hbm [thread:$0]  %s707, 32, %s705, %s693, 16, 16, 1
        $region64: #{tpu_custom_call.1} parent=47 // pred_fallthru
          _
      $region48: #{tpu_custom_call.1} parent=5 // pred_fallthru
        _
      %p713 = scmp.le.s32.totalorder 2, %s28
      // Predicated region
      $region65: #{tpu_custom_call.1} parent=5 // pred_check
        %p714 = pneg %p713
      $region66: #{tpu_custom_call.1} parent=5 // pred_check_branch
        %716 = sbr.rel (%p714) target = $region68
      $region67: #{tpu_custom_call.1} parent=5 // pred_region
        %s717 = ssub.s32 %s28, 2
        // Predicated region
        $region69: #{tpu_custom_call.1} parent=67 // pred_check
          %p718 = pneg %p209
        $region70: #{tpu_custom_call.1} parent=67 // pred_check_branch
          %720 = sbr.rel (%p718) target = $region72
        $region71: #{tpu_custom_call.1} parent=67 // pred_region
          %s721 = sand.u32 %s194, 1
          %s722 = scalar_lea.sflag [#allocation7], %s721
          %s723 = sand.u32 %s194, 1
          %s724 = smul.addr %s723, 2
          %s725 = scalar_lea.vmem [#allocation11], %s724
          %726 = dma.done %s722, 32
        $region72: #{tpu_custom_call.1} parent=67 // pred_fallthru
          _
      $region68: #{tpu_custom_call.1} parent=5 // pred_fallthru
        _
    $region6: #{tpu_custom_call.1} parent=1 // loop_footer
      %s32 = sadd.s32 1, %s28
    $region7: #{tpu_custom_call.1} parent=1 // loop_footer_branch
      %27 = sbr.rel target = $region3
    $region8: #{tpu_custom_call.1} parent=1 // loop_exit
      _
    %727 = vsyncpa [#allocation6], 1
    %s728 = scalar_lea.sflag [#allocation6], 1
    %729 = vsyncpa %s728, 1
    %730 = vsyncpa [#allocation9], 1
    %731 = vsyncpa [#allocation7], 1
    %s732 = scalar_lea.sflag [#allocation7], 1
    %733 = vsyncpa %s732, 1

// kernel: tpu_custom_call.1
$region0: #{tpu_custom_call.1}
  #allocation0 [shape = 'u32[]', space=smem, size = 0x4, offset = 0x4, fixed_abs, tag = 'smem constant byte address 0x4 - core index']
  #allocation1 [shape = 'u32[144,128]{1,0:T(1,128)}', space=vmem, size = 0x12000, scoped, tag = 'internal scratch']
  #allocation2 [shape = 's32[1]{0}', space=sflag, size = 0x4, scoped, tag = 'scoped memory for tpu_custom_call.1']
  #allocation3 [shape = 'u8[512]{0}', space=smem, size = 0x200, scoped, tag = 'prefetched SMEM operand 0']
  #allocation4 [shape = 'f32[1]{0:T(128)S(6)}', space=smem, size = 0x200, scoped, tag = 'scoped memory for tpu_custom_call.1']
  %s0 = inlined_call_operand.vmem [shape: s32[4], index: 0, kind: input, shape index: {}]
  %s1 = inlined_call_operand.hbm [shape: bf16[4,8,128], index: 1, kind: input, shape index: {}]
  %s2 = inlined_call_operand.hbm [shape: bf16[128,128], index: 2, kind: input, shape index: {}]
  %s3 = inlined_call_operand.vmem [shape: f32[1,128], index: 3, kind: input, shape index: {}]
  %s4 = inlined_call_operand.vmem [shape: f32[1,128], index: 4, kind: input, shape index: {}]
  %s5 = inlined_call_operand.<no memory space> [shape: f32[1], index: 5, kind: input, shape index: {}]
  %s6 = inlined_call_operand.hbm [shape: bf16[128,128], index: 6, kind: input, shape index: {}]
  %s7 = inlined_call_operand.vmem [shape: f32[1,128], index: 7, kind: input, shape index: {}]
  %s8 = inlined_call_operand.hbm [shape: f32[4,1,128], index: 8, kind: output, shape index: {}]
  %s9 = sld [smem:[#allocation0]]
  $region73: #{tpu_custom_call.1} parent=0
    _
  %s11 = ssub.s32 1, %s9
  %s12 = scalar_select 0, %s11, %s9
  %s13 = sshll.u32 %s0, 4
  %s14 = int_to_ptr.vmem [resolvable:$true] %s13
  %16 = dma.vmem_to_smem %s14, 16, [#allocation3], [#allocation2]
  %17 = sst [smem:[#allocation4]] %s5
  %18 = dma.done [#allocation2], 16
  %19 = sfence
  $region1: #{tpu_custom_call.1} parent=0
    #allocation5 [shape = 'u8[8192]{0}', space=vmem, size = 0x2000, scoped, tag = 'input window, operand 1']
    #allocation6 [shape = 's32[2]{0}', space=sflag, size = 0x8, scoped, tag = 'scoped memory for tpu_custom_call.1']
    #allocation7 [shape = 's32[2]{0}', space=sflag, size = 0x8, scoped, tag = 'scoped memory for tpu_custom_call.1']
    #allocation8 [shape = 'u8[32768]{0}', space=vmem, size = 0x8000, scoped, tag = 'input window, operand 2, single buffered']
    #allocation9 [shape = 's32[1]{0}', space=sflag, size = 0x4, scoped, tag = 'scoped memory for tpu_custom_call.1']
    #allocation10 [shape = 'u8[32768]{0}', space=vmem, size = 0x8000, scoped, tag = 'input window, operand 6, single buffered']
    #allocation11 [shape = 'u8[2048]{0}', space=vmem, size = 0x800, scoped, tag = 'output window, operand 0']
    %20 = vsyncpa [#allocation6], 0
    %s21 = scalar_lea.sflag [#allocation6], 1
    %22 = vsyncpa %s21, 0
    %23 = vsyncpa [#allocation9], 0
    %24 = vsyncpa [#allocation7], 0
    %s25 = scalar_lea.sflag [#allocation7], 1
    %26 = vsyncpa %s25, 0
    loop: start=0, step=1, limit=4
    $region2: #{tpu_custom_call.1} parent=1 // loop_pre_header
      _
    $region3: #{tpu_custom_call.1} parent=1 // loop_header
      %s28 = sphi 0, %s32
      %p29 = scmp.ge.s32.totalorder %s28, 4
      %s38 = sphi 0, %s40
      %s41 = sphi 0, %s38
      %s42 = sphi 0, %s41
      %s58 = sphi 0, %s42
      %s62 = sphi 0, %s62
      %s64 = sphi 0, %s62
      %s65 = sphi 0, %s64
      %s79 = sphi 0, %s65
      %s83 = sphi 0, %s83
      %s85 = sphi 0, %s83
      %s86 = sphi 0, %s85
      %s100 = sphi 0, %s86
      %s104 = sphi 0, %s104
      %s106 = sphi 0, %s104
      %s107 = sphi 0, %s106
      %s121 = sphi 0, %s107
      %s125 = sphi 0, %s125
      %s127 = sphi 0, %s125
      %s128 = sphi 0, %s127
      %s142 = sphi 0, %s128
      %s146 = sphi 0, %s146
      %s148 = sphi 0, %s146
      %s149 = sphi 0, %s148
      %s163 = sphi 0, %s149
      %s167 = sphi 0, %s167
      %s169 = sphi 0, %s167
      %s170 = sphi 0, %s169
      %s184 = sphi 0, %s170
      %s190 = sphi 0, %s192
      %s193 = sphi 0, %s190
      %s194 = sphi 0, %s193
      %s210 = sphi 0, %s194
    $region4: #{tpu_custom_call.1} parent=1 // loop_header_branch
      %31 = sbr.rel (%p29) target = $region8
    $region5: #{tpu_custom_call.1} parent=1 // loop_body
      %s33 = ssub.s32 %s28, 1
      %s34 = ssub.s32 %s28, 2
      %s35 = sadd.s32 %s28, 1
      %s36 = ssub.s32 %s28, %s35
      %p37 = scmp.eq.s32.totalorder %s36, 0
      %s39 = sadd.s32 %s38, 1
      %s40 = scalar_select %p37, %s38, %s39
      %p43 = pneg %p37
      %p44 = scmp.eq.s32.totalorder %s28, 1
      %p45 = por %p43, %p44
      %p46 = scmp.ne.s32.totalorder %s38, %s41
      %p47 = scmp.eq.s32.totalorder %s28, 0
      %p48 = por %p46, %p47
      %p49 = scmp.ne.s32.totalorder %s38, %s41
      %p50 = scmp.eq.s32.totalorder %s33, 1
      %p51 = por %p49, %p50
      %p52 = scmp.ne.s32.totalorder %s41, %s42
      %p53 = scmp.eq.s32.totalorder %s33, 0
      %p54 = por %p52, %p53
      %p55 = scmp.ne.s32.totalorder %s41, %s42
      %p56 = scmp.eq.s32.totalorder %s34, 1
      %p57 = por %p55, %p56
      %p59 = scmp.ne.s32.totalorder %s42, %s58
      %p60 = scmp.eq.s32.totalorder %s34, 0
      %p61 = por %p59, %p60
      %s63 = sadd.s32 %s62, 1
      %p66 = scmp.eq.s32.totalorder %s28, 1
      %p67 = scmp.ne.s32.totalorder %s62, %s64
      %p68 = scmp.eq.s32.totalorder %s28, 0
      %p69 = por %p67, %p68
      %p70 = scmp.ne.s32.totalorder %s62, %s64
      %p71 = scmp.eq.s32.totalorder %s33, 1
      %p72 = por %p70, %p71
      %p73 = scmp.ne.s32.totalorder %s64, %s65
      %p74 = scmp.eq.s32.totalorder %s33, 0
      %p75 = por %p73, %p74
      %p76 = scmp.ne.s32.totalorder %s64, %s65
      %p77 = scmp.eq.s32.totalorder %s34, 1
      %p78 = por %p76, %p77
      %p80 = scmp.ne.s32.totalorder %s65, %s79
      %p81 = scmp.eq.s32.totalorder %s34, 0
      %p82 = por %p80, %p81
      %s84 = sadd.s32 %s83, 1
      %p87 = scmp.eq.s32.totalorder %s28, 1
      %p88 = scmp.ne.s32.totalorder %s83, %s85
      %p89 = scmp.eq.s32.totalorder %s28, 0
      %p90 = por %p88, %p89
      %p91 = scmp.ne.s32.totalorder %s83, %s85
      %p92 = scmp.eq.s32.totalorder %s33, 1
      %p93 = por %p91, %p92
      %p94 = scmp.ne.s32.totalorder %s85, %s86
      %p95 = scmp.eq.s32.totalorder %s33, 0
      %p96 = por %p94, %p95
      %p97 = scmp.ne.s32.totalorder %s85, %s86
      %p98 = scmp.eq.s32.totalorder %s34, 1
      %p99 = por %p97, %p98
      %p101 = scmp.ne.s32.totalorder %s86, %s100
      %p102 = scmp.eq.s32.totalorder %s34, 0
      %p103 = por %p101, %p102
      %s105 = sadd.s32 %s104, 1
      %p108 = scmp.eq.s32.totalorder %s28, 1
      %p109 = scmp.ne.s32.totalorder %s104, %s106
      %p110 = scmp.eq.s32.totalorder %s28, 0
      %p111 = por %p109, %p110
      %p112 = scmp.ne.s32.totalorder %s104, %s106
      %p113 = scmp.eq.s32.totalorder %s33, 1
      %p114 = por %p112, %p113
      %p115 = scmp.ne.s32.totalorder %s106, %s107
      %p116 = scmp.eq.s32.totalorder %s33, 0
      %p117 = por %p115, %p116
      %p118 = scmp.ne.s32.totalorder %s106, %s107
      %p119 = scmp.eq.s32.totalorder %s34, 1
      %p120 = por %p118, %p119
      %p122 = scmp.ne.s32.totalorder %s107, %s121
      %p123 = scmp.eq.s32.totalorder %s34, 0
      %p124 = por %p122, %p123
      %s126 = sadd.s32 %s125, 1
      %p129 = scmp.eq.s32.totalorder %s28, 1
      %p130 = scmp.ne.s32.totalorder %s125, %s127
      %p131 = scmp.eq.s32.totalorder %s28, 0
      %p132 = por %p130, %p131
      %p133 = scmp.ne.s32.totalorder %s125, %s127
      %p134 = scmp.eq.s32.totalorder %s33, 1
      %p135 = por %p133, %p134
      %p136 = scmp.ne.s32.totalorder %s127, %s128
      %p137 = scmp.eq.s32.totalorder %s33, 0
      %p138 = por %p136, %p137
      %p139 = scmp.ne.s32.totalorder %s127, %s128
      %p140 = scmp.eq.s32.totalorder %s34, 1
      %p141 = por %p139, %p140
      %p143 = scmp.ne.s32.totalorder %s128, %s142
      %p144 = scmp.eq.s32.totalorder %s34, 0
      %p145 = por %p143, %p144
      %s147 = sadd.s32 %s146, 1
      %p150 = scmp.eq.s32.totalorder %s28, 1
      %p151 = scmp.ne.s32.totalorder %s146, %s148
      %p152 = scmp.eq.s32.totalorder %s28, 0
      %p153 = por %p151, %p152
      %p154 = scmp.ne.s32.totalorder %s146, %s148
      %p155 = scmp.eq.s32.totalorder %s33, 1
      %p156 = por %p154, %p155
      %p157 = scmp.ne.s32.totalorder %s148, %s149
      %p158 = scmp.eq.s32.totalorder %s33, 0
      %p159 = por %p157, %p158
      %p160 = scmp.ne.s32.totalorder %s148, %s149
      %p161 = scmp.eq.s32.totalorder %s34, 1
      %p162 = por %p160, %p161
      %p164 = scmp.ne.s32.totalorder %s149, %s163
      %p165 = scmp.eq.s32.totalorder %s34, 0
      %p166 = por %p164, %p165
      %s168 = sadd.s32 %s167, 1
      %p171 = scmp.eq.s32.totalorder %s28, 1
      %p172 = scmp.ne.s32.totalorder %s167, %s169
      %p173 = scmp.eq.s32.totalorder %s28, 0
      %p174 = por %p172, %p173
      %p175 = scmp.ne.s32.totalorder %s167, %s169
      %p176 = scmp.eq.s32.totalorder %s33, 1
      %p177 = por %p175, %p176
      %p178 = scmp.ne.s32.totalorder %s169, %s170
      %p179 = scmp.eq.s32.totalorder %s33, 0
      %p180 = por %p178, %p179
      %p181 = scmp.ne.s32.totalorder %s169, %s170
      %p182 = scmp.eq.s32.totalorder %s34, 1
      %p183 = por %p181, %p182
      %p185 = scmp.ne.s32.totalorder %s170, %s184
      %p186 = scmp.eq.s32.totalorder %s34, 0
      %p187 = por %p185, %p186
      %s188 = ssub.s32 %s28, %s35
      %p189 = scmp.eq.s32.totalorder %s188, 0
      %s191 = sadd.s32 %s190, 1
      %s192 = scalar_select %p189, %s190, %s191
      %p195 = pneg %p189
      %p196 = scmp.eq.s32.totalorder %s28, 1
      %p197 = por %p195, %p196
      %p198 = scmp.ne.s32.totalorder %s190, %s193
      %p199 = scmp.eq.s32.totalorder %s28, 0
      %p200 = por %p198, %p199
      %p201 = scmp.ne.s32.totalorder %s190, %s193
      %p202 = scmp.eq.s32.totalorder %s33, 1
      %p203 = por %p201, %p202
      %p204 = scmp.ne.s32.totalorder %s193, %s194
      %p205 = scmp.eq.s32.totalorder %s33, 0
      %p206 = por %p204, %p205
      %p207 = scmp.ne.s32.totalorder %s193, %s194
      %p208 = scmp.eq.s32.totalorder %s34, 1
      %p209 = por %p207, %p208
      %p211 = scmp.ne.s32.totalorder %s194, %s210
      %p212 = scmp.eq.s32.totalorder %s34, 0
      %p213 = por %p211, %p212
      %p214 = scmp.le.s32.totalorder 1, %s28
      %p215 = scmp.lt.s32.totalorder %s28, 3
      %p216 = pnand %p214, %p215
      %p217 = pneg %p216
      // Predicated region
      $region9: #{tpu_custom_call.1} parent=5 // pred_check
        _
      $region10: #{tpu_custom_call.1} parent=5 // pred_check_branch
        %219 = sbr.rel (%p216) target = $region12
      $region11: #{tpu_custom_call.1} parent=5 // pred_region
        %s220 = ssub.s32 %s28, 1
        // Predicated region
        $region13: #{tpu_custom_call.1} parent=11 // pred_check
          %p221 = pneg %p75
        $region14: #{tpu_custom_call.1} parent=11 // pred_check_branch
          %223 = sbr.rel (%p221) target = $region16
        $region15: #{tpu_custom_call.1} parent=11 // pred_region
          %s225 = ssub.s32 1024, 1024
          %226 = vsyncadd [#allocation9], %s225
          %s227 = sshll.u32 [#allocation8], 4
          %s228 = int_to_ptr.vmem [resolvable:$true] %s227
          %233 = dma.hbm_to_vmem [thread:$0]  %s2, 1024, %s228, [#allocation9], 64, 64, 4
        $region16: #{tpu_custom_call.1} parent=11 // pred_fallthru
          _
        // Predicated region
        $region17: #{tpu_custom_call.1} parent=11 // pred_check
          %p234 = pneg %p96
        $region18: #{tpu_custom_call.1} parent=11 // pred_check_branch
          %236 = sbr.rel (%p234) target = $region20
        $region19: #{tpu_custom_call.1} parent=11 // pred_region
          _
        $region20: #{tpu_custom_call.1} parent=11 // pred_fallthru
          _
        // Predicated region
        $region21: #{tpu_custom_call.1} parent=11 // pred_check
          %p237 = pneg %p117
        $region22: #{tpu_custom_call.1} parent=11 // pred_check_branch
          %239 = sbr.rel (%p237) target = $region24
        $region23: #{tpu_custom_call.1} parent=11 // pred_region
          _
        $region24: #{tpu_custom_call.1} parent=11 // pred_fallthru
          _
        // Predicated region
        $region25: #{tpu_custom_call.1} parent=11 // pred_check
          %p240 = pneg %p138
        $region26: #{tpu_custom_call.1} parent=11 // pred_check_branch
          %242 = sbr.rel (%p240) target = $region28
        $region27: #{tpu_custom_call.1} parent=11 // pred_region
          _
        $region28: #{tpu_custom_call.1} parent=11 // pred_fallthru
          _
        // Predicated region
        $region29: #{tpu_custom_call.1} parent=11 // pred_check
          %p243 = pneg %p159
        $region30: #{tpu_custom_call.1} parent=11 // pred_check_branch
          %245 = sbr.rel (%p243) target = $region32
        $region31: #{tpu_custom_call.1} parent=11 // pred_region
          %s247 = ssub.s32 1024, 1024
          %248 = vsyncadd [#allocation9], %s247
          %s249 = sshll.u32 [#allocation10], 4
          %s250 = int_to_ptr.vmem [resolvable:$true] %s249
          %255 = dma.hbm_to_vmem [thread:$0]  %s6, 1024, %s250, [#allocation9], 64, 64, 4
        $region32: #{tpu_custom_call.1} parent=11 // pred_fallthru
          _
        // Predicated region
        $region33: #{tpu_custom_call.1} parent=11 // pred_check
          %p256 = pneg %p180
        $region34: #{tpu_custom_call.1} parent=11 // pred_check_branch
          %258 = sbr.rel (%p256) target = $region36
        $region35: #{tpu_custom_call.1} parent=11 // pred_region
          _
        $region36: #{tpu_custom_call.1} parent=11 // pred_fallthru
          _
      $region12: #{tpu_custom_call.1} parent=5 // pred_fallthru
        _
      %p259 = scmp.lt.s32.totalorder %s28, 2
      // Predicated region
      $region37: #{tpu_custom_call.1} parent=5 // pred_check
        %p260 = pneg %p259
      $region38: #{tpu_custom_call.1} parent=5 // pred_check_branch
        %262 = sbr.rel (%p260) target = $region40
      $region39: #{tpu_custom_call.1} parent=5 // pred_region
        // Predicated region
        $region41: #{tpu_custom_call.1} parent=39 // pred_check
          %p263 = pneg %p48
        $region42: #{tpu_custom_call.1} parent=39 // pred_check_branch
          %265 = sbr.rel (%p263) target = $region44
        $region43: #{tpu_custom_call.1} parent=39 // pred_region
          %s266 = sand.u32 %s38, 1
          %s267 = scalar_lea.sflag [#allocation6], %s266
          %s268 = sand.u32 %s38, 1
          %s269 = smul.addr %s268, 8
          %s270 = scalar_lea.vmem [#allocation5], %s269
          %s271 = smul.u32 2, %s28
          %s273 = ssub.s32 128, 128
          %274 = vsyncadd %s267, %s273
          %s275 = smul.addr %s271, 64
          %s276 = scalar_lea.hbm %s1, %s275
          %s277 = sshll.u32 %s270, 4
          %s278 = int_to_ptr.vmem [resolvable:$true] %s277
          %283 = dma.hbm_to_vmem [thread:$0]  %s276, 128, %s278, %s267, 64, 64, 4
        $region44: #{tpu_custom_call.1} parent=39 // pred_fallthru
          _
      $region40: #{tpu_custom_call.1} parent=5 // pred_fallthru
        _
      %p284 = scmp.le.s32.totalorder 1, %s28
      %p285 = scmp.lt.s32.totalorder %s28, 3
      %p286 = pnand %p284, %p285
      %p287 = pneg %p286
      // Predicated region
      $region45: #{tpu_custom_call.1} parent=5 // pred_check
        _
      $region46: #{tpu_custom_call.1} parent=5 // pred_check_branch
        %289 = sbr.rel (%p286) target = $region48
      $region47: #{tpu_custom_call.1} parent=5 // pred_region
        %s290 = ssub.s32 %s28, 1
        %s291 = sand.u32 %s41, 1
        %s292 = scalar_lea.sflag [#allocation6], %s291
        %s293 = sand.u32 %s41, 1
        %s294 = smul.addr %s293, 8
        %s295 = scalar_lea.vmem [#allocation5], %s294
        // Predicated region
        $region49: #{tpu_custom_call.1} parent=47 // pred_check
          %p296 = pneg %p54
        $region50: #{tpu_custom_call.1} parent=47 // pred_check_branch
          %298 = sbr.rel (%p296) target = $region52
        $region51: #{tpu_custom_call.1} parent=47 // pred_region
          %299 = dma.done %s292, 128
        $region52: #{tpu_custom_call.1} parent=47 // pred_fallthru
          _
        // Predicated region
        $region53: #{tpu_custom_call.1} parent=47 // pred_check
          %p300 = pneg %p75
        $region54: #{tpu_custom_call.1} parent=47 // pred_check_branch
          %302 = sbr.rel (%p300) target = $region56
        $region55: #{tpu_custom_call.1} parent=47 // pred_region
          %303 = dma.done [#allocation9], 1024
        $region56: #{tpu_custom_call.1} parent=47 // pred_fallthru
          _
        // Predicated region
        $region57: #{tpu_custom_call.1} parent=47 // pred_check
          %p304 = pneg %p159
        $region58: #{tpu_custom_call.1} parent=47 // pred_check_branch
          %306 = sbr.rel (%p304) target = $region60
        $region59: #{tpu_custom_call.1} parent=47 // pred_region
          %307 = dma.done [#allocation9], 1024
        $region60: #{tpu_custom_call.1} parent=47 // pred_fallthru
          _
        %s308 = sand.u32 %s41, 1
        %s309 = scalar_lea.sflag [#allocation6], %s308
        %s310 = sand.u32 %s41, 1
        %s311 = smul.addr %s310, 8
        %s312 = scalar_lea.vmem [#allocation5], %s311
        %p313 = pneg %p54
        %p314 = pneg %p51
        %p315 = pneg %p75
        %p316 = pneg %p72
        %p317 = pneg %p96
        %p318 = pneg %p93
        %p319 = pneg %p117
        %p320 = pneg %p114
        %p321 = pneg %p138
        %p322 = pneg %p135
        %p323 = pneg %p159
        %p324 = pneg %p156
        %p325 = pneg %p180
        %p326 = pneg %p177
        %p327 = pneg %p206
        %p328 = pneg %p203
        %s329 = sand.u32 %s193, 1
        %s330 = scalar_lea.sflag [#allocation7], %s329
        %s331 = sand.u32 %s193, 1
        %s332 = smul.addr %s331, 2
        %s333 = scalar_lea.vmem [#allocation11], %s332
        %s334 = smul.u32 2, %s33
        %s335 = smul.u32 2, %s33
        %v337 = vld [vmem:[%s295] sm:$0xf]
        %v338 = vld [vmem:[%s295 + $0x4] sm:$0xf]
        %v339 = vld [vmem:[#allocation8] sm:$0xf]
        %v340 = vld [vmem:[#allocation8 + $0x4] sm:$0xf]
        %v341 = vld [vmem:[#allocation8 + $0x8] sm:$0xf]
        %v342 = vld [vmem:[#allocation8 + $0xc] sm:$0xf]
        %v343 = vld [vmem:[#allocation8 + $0x10] sm:$0xf]
        %v344 = vld [vmem:[#allocation8 + $0x14] sm:$0xf]
        %v345 = vld [vmem:[#allocation8 + $0x18] sm:$0xf]
        %v346 = vld [vmem:[#allocation8 + $0x1c] sm:$0xf]
        %v347 = vld [vmem:[#allocation8 + $0x20] sm:$0xf]
        %v348 = vld [vmem:[#allocation8 + $0x24] sm:$0xf]
        %v349 = vld [vmem:[#allocation8 + $0x28] sm:$0xf]
        %v350 = vld [vmem:[#allocation8 + $0x2c] sm:$0xf]
        %v351 = vld [vmem:[#allocation8 + $0x30] sm:$0xf]
        %v352 = vld [vmem:[#allocation8 + $0x34] sm:$0xf]
        %v353 = vld [vmem:[#allocation8 + $0x38] sm:$0xf]
        %v354 = vld [vmem:[#allocation8 + $0x3c] sm:$0xf]
        %v355 = vld [vmem:[%s3] sm:$0x1]
        %v357 = vlaneseq
        %v358 = vshrl.u32 %v357, 7
        %v359 = vsub.s32 0, %v358
        %v360 = vrot.slane %v355, %v359
        %v364 = vunpack.c.l.b16 %v337
        %v365 = vunpack.c.l.b16 %v338
        %v366 = vpack.c.b16 %v365, %v364
        %v384 = vunpack.c.l.b16 %v339
        %v385 = vunpack.c.l.b16 %v340
        %v386 = vunpack.c.l.b16 %v341
        %v387 = vunpack.c.l.b16 %v342
        %v388 = vunpack.c.l.b16 %v343
        %v389 = vunpack.c.l.b16 %v344
        %v390 = vunpack.c.l.b16 %v345
        %v391 = vunpack.c.l.b16 %v346
        %v392 = vunpack.c.l.b16 %v347
        %v393 = vunpack.c.l.b16 %v348
        %v394 = vunpack.c.l.b16 %v349
        %v395 = vunpack.c.l.b16 %v350
        %v396 = vunpack.c.l.b16 %v351
        %v397 = vunpack.c.l.b16 %v352
        %v398 = vunpack.c.l.b16 %v353
        %v399 = vunpack.c.l.b16 %v354
        %v400 = vpack.c.b16 %v385, %v384
        %v401 = vpack.c.b16 %v387, %v386
        %v402 = vpack.c.b16 %v389, %v388
        %v403 = vpack.c.b16 %v391, %v390
        %v404 = vpack.c.b16 %v393, %v392
        %v405 = vpack.c.b16 %v395, %v394
        %v406 = vpack.c.b16 %v397, %v396
        %v407 = vpack.c.b16 %v399, %v398
        %416 = vmatprep.subr.bf16.mxu0 0
        %417 = vmatpush1.bf16.msra.mxu0 %v400
        %418 = vmatprep.subr.bf16.mxu0 0
        %419 = vmatpush1.bf16.msra.mxu0 %v401
        %420 = vmatprep.subr.bf16.mxu0 0
        %421 = vmatpush1.bf16.msra.mxu0 %v402
        %422 = vmatprep.subr.bf16.mxu0 0
        %423 = vmatpush1.bf16.msra.mxu0 %v403
        %424 = vmatprep.subr.bf16.mxu0 0
        %425 = vmatpush1.bf16.msra.mxu0 %v404
        %426 = vmatprep.subr.bf16.mxu0 0
        %427 = vmatpush1.bf16.msra.mxu0 %v405
        %428 = vmatprep.subr.bf16.mxu0 0
        %429 = vmatpush1.bf16.msra.mxu0 %v406
        %430 = vmatprep.subr.bf16.mxu0 0
        %431 = vmatpush1.bf16.msra.mxu0 %v407
        %432 = vmatprep.subr.bf16.mxu0 0
        %433 = vmatpush1.bf16.msra.mxu0 0
        %434 = vmatprep.subr.bf16.mxu0 0
        %435 = vmatpush1.bf16.msra.mxu0 0
        %436 = vmatprep.subr.bf16.mxu0 0
        %437 = vmatpush1.bf16.msra.mxu0 0
        %438 = vmatprep.subr.bf16.mxu0 0
        %439 = vmatpush1.bf16.msra.mxu0 0
        %440 = vmatprep.subr.bf16.mxu0 0
        %441 = vmatpush1.bf16.msra.mxu0 0
        %442 = vmatprep.subr.bf16.mxu0 0
        %443 = vmatpush1.bf16.msra.mxu0 0
        %444 = vmatprep.subr.bf16.mxu0 0
        %445 = vmatpush1.bf16.msra.mxu0 0
        %446 = vmatprep.subr.bf16.mxu0 0
        %447 = vmatpush1.bf16.msra.mxu0 0
        %448 = vmatprep.mubr.bf16.mxu0 0
        %449 = vmatmul.mubr.bf16.gmra.mrb[0].mxu0 %v366
        %v450 = vpop.f32.mrb[0].mxu0
        %v451 = vadd.f32 %v360, %v450
        %v452 = vpop.f32.mrb[0].mxu0
        %v453 = vpop.f32.mrb[0].mxu0
        %v454 = vadd.f32 %v360, %v453
        %v455 = vpop.f32.mrb[0].mxu0
        %456 = vdwg.mxu0
        %v457 = vtanh.pop %v451
        %v458 = vtanh.pop %v454
        %v459 = vld [vmem:[%s4] sm:$0x1]
        %v461 = vlaneseq
        %v462 = vshrl.u32 %v461, 7
        %v463 = vsub.s32 0, %v462
        %v464 = vrot.slane %v459, %v463
        %v466 = vmul.f32 %v457, %v464
        %v467 = vmul.f32 %v458, %v464
        %468 = vadd.xlane.f32.xlu0 %v466
        %v469 = vpop.xlane.xlu0 %468
        %470 = vadd.xlane.f32.xlu0 %v467
        %v471 = vpop.xlane.xlu0 %470
        %s472 = sld [smem:[#allocation4]]
        %v473 = vstv %s472
        %v474 = vadd.f32 %v469, %v473
        %v475 = vadd.f32 %v471, %v473
        %s476 = smul.u32 %s33, 2
        %v477 = vlaneseq
        %v478 = vand.u32 %v477, 127
        %v479 = vlaneseq
        %v480 = vshrl.u32 %v479, 7
        %vm481 = vcmp.eq.s32.totalorder %v480, 0
        %s482 = sld [smem:[#allocation3 + %s476]]
        %v483 = vstv %s482
        %v484 = vsel %vm481, %v483, 0
        %vm485 = vcmp.eq.s32.totalorder %v480, 1
        %s486 = sadd.s32 %s476, 1
        %s487 = sld [smem:[#allocation3 + %s486]]
        %v488 = vstv %s487
        %v489 = vsel %vm485, %v488, %v484
        %vm490 = vcmp.lt.s32.totalorder %v478, %v489
        %v493 = vlaneseq
        %v494 = vshrl.u32 %v493, 7
        %v495 = vsub.s32 %v478, %v494
        %v496 = vrot.slane %v474, %v495
        %v497 = vlaneseq
        %v498 = vshrl.u32 %v497, 7
        %v499 = vsub.s32 %v478, %v498
        %v500 = vrot.slane %v475, %v499
        %vm501 = vcmask 1041409
        %v502 = vsel %vm501, %v500, %v496
        %v504 = vsel %vm490, %v502, -1e+20
        %vm505 = vcmask 58368
        %v506 = vsel %vm505, %v504, -inf
        %507 = vmax.xlane.f32.xlu0 %v506
        %v508 = vpop.xlane.xlu0 %507
        %v509 = vsub.f32 %v504, %v508
        %v510 = vmul.f32 %v509, 1.442695
        %v511 = vpow.pop %v510
        %v512 = vsel %vm505, %v511, 0.0
        %513 = vadd.xlane.f32.xlu0 %v512
        %v514 = vpop.xlane.xlu0 %513
        %v515 = vrcp.pop %v514
        %v516 = vmul.f32 %v511, %v515
        %v517 = vlaneseq
        %v518 = vshrl.u32 %v517, 7
        %v519 = vsub.s32 0, %v518
        %v520 = vrot.slane %v516, %v519
        %522 = vbcast.lane.b32.xlu0 %v520, 256
        %v523 = vpop.permute.xlu0 %522
        %v524 = vlaneseq
        %v525 = vshrl.u32 %v524, 7
        %v526 = vsub.s32 1, %v525
        %v527 = vrot.slane %v516, %v526
        %529 = vbcast.lane.b32.xlu0 %v527, 256
        %v530 = vpop.permute.xlu0 %529
        %v531 = vmul.f32 %v457, %v523
        %v532 = vmul.f32 %v458, %v530
        %v533 = vrot.slane %v531, 4
        %v534 = vadd.f32 %v531, %v533
        %v535 = vrot.slane %v534, 2
        %v536 = vadd.f32 %v534, %v535
        %v537 = vrot.slane %v536, 1
        %v538 = vadd.f32 %v536, %v537
        %v539 = vrot.slane %v532, 4
        %v540 = vadd.f32 %v532, %v539
        %v541 = vrot.slane %v540, 2
        %v542 = vadd.f32 %v540, %v541
        %v543 = vrot.slane %v542, 1
        %v544 = vadd.f32 %v542, %v543
        %v545 = vpack.c.bf16 %v538, %v538
        %v546 = vpack.c.bf16 %v544, %v544
        %v547 = vld [vmem:[#allocation10] sm:$0xf]
        %v548 = vld [vmem:[#allocation10 + $0x4] sm:$0xf]
        %v549 = vld [vmem:[#allocation10 + $0x8] sm:$0xf]
        %v550 = vld [vmem:[#allocation10 + $0xc] sm:$0xf]
        %v551 = vld [vmem:[#allocation10 + $0x10] sm:$0xf]
        %v552 = vld [vmem:[#allocation10 + $0x14] sm:$0xf]
        %v553 = vld [vmem:[#allocation10 + $0x18] sm:$0xf]
        %v554 = vld [vmem:[#allocation10 + $0x1c] sm:$0xf]
        %v555 = vld [vmem:[#allocation10 + $0x20] sm:$0xf]
        %v556 = vld [vmem:[#allocation10 + $0x24] sm:$0xf]
        %v557 = vld [vmem:[#allocation10 + $0x28] sm:$0xf]
        %v558 = vld [vmem:[#allocation10 + $0x2c] sm:$0xf]
        %v559 = vld [vmem:[#allocation10 + $0x30] sm:$0xf]
        %v560 = vld [vmem:[#allocation10 + $0x34] sm:$0xf]
        %v561 = vld [vmem:[#allocation10 + $0x38] sm:$0xf]
        %v562 = vld [vmem:[#allocation10 + $0x3c] sm:$0xf]
        %v563 = vld [vmem:[%s7] sm:$0x1]
        %v565 = vlaneseq
        %v566 = vshrl.u32 %v565, 7
        %v567 = vsub.s32 0, %v566
        %v568 = vrot.slane %v563, %v567
        %v572 = vunpack.c.l.b16 %v545
        %v573 = vunpack.c.l.b16 %v546
        %v574 = vsel %vm501, %v573, %v572
        %v575 = vpack.c.b16 %v574, %v574
        %v593 = vunpack.c.l.b16 %v547
        %v594 = vunpack.c.l.b16 %v548
        %v595 = vunpack.c.l.b16 %v549
        %v596 = vunpack.c.l.b16 %v550
        %v597 = vunpack.c.l.b16 %v551
        %v598 = vunpack.c.l.b16 %v552
        %v599 = vunpack.c.l.b16 %v553
        %v600 = vunpack.c.l.b16 %v554
        %v601 = vunpack.c.l.b16 %v555
        %v602 = vunpack.c.l.b16 %v556
        %v603 = vunpack.c.l.b16 %v557
        %v604 = vunpack.c.l.b16 %v558
        %v605 = vunpack.c.l.b16 %v559
        %v606 = vunpack.c.l.b16 %v560
        %v607 = vunpack.c.l.b16 %v561
        %v608 = vunpack.c.l.b16 %v562
        %v609 = vpack.c.b16 %v594, %v593
        %v610 = vpack.c.b16 %v596, %v595
        %v611 = vpack.c.b16 %v598, %v597
        %v612 = vpack.c.b16 %v600, %v599
        %v613 = vpack.c.b16 %v602, %v601
        %v614 = vpack.c.b16 %v604, %v603
        %v615 = vpack.c.b16 %v606, %v605
        %v616 = vpack.c.b16 %v608, %v607
        %625 = vmatprep.subr.bf16.mxu0 0
        %626 = vmatpush1.bf16.msra.mxu0 %v609
        %627 = vmatprep.subr.bf16.mxu0 0
        %628 = vmatpush1.bf16.msra.mxu0 %v610
        %629 = vmatprep.subr.bf16.mxu0 0
        %630 = vmatpush1.bf16.msra.mxu0 %v611
        %631 = vmatprep.subr.bf16.mxu0 0
        %632 = vmatpush1.bf16.msra.mxu0 %v612
        %633 = vmatprep.subr.bf16.mxu0 0
        %634 = vmatpush1.bf16.msra.mxu0 %v613
        %635 = vmatprep.subr.bf16.mxu0 0
        %636 = vmatpush1.bf16.msra.mxu0 %v614
        %637 = vmatprep.subr.bf16.mxu0 0
        %638 = vmatpush1.bf16.msra.mxu0 %v615
        %639 = vmatprep.subr.bf16.mxu0 0
        %640 = vmatpush1.bf16.msra.mxu0 %v616
        %641 = vmatprep.subr.bf16.mxu0 0
        %642 = vmatpush1.bf16.msra.mxu0 0
        %643 = vmatprep.subr.bf16.mxu0 0
        %644 = vmatpush1.bf16.msra.mxu0 0
        %645 = vmatprep.subr.bf16.mxu0 0
        %646 = vmatpush1.bf16.msra.mxu0 0
        %647 = vmatprep.subr.bf16.mxu0 0
        %648 = vmatpush1.bf16.msra.mxu0 0
        %649 = vmatprep.subr.bf16.mxu0 0
        %650 = vmatpush1.bf16.msra.mxu0 0
        %651 = vmatprep.subr.bf16.mxu0 0
        %652 = vmatpush1.bf16.msra.mxu0 0
        %653 = vmatprep.subr.bf16.mxu0 0
        %654 = vmatpush1.bf16.msra.mxu0 0
        %655 = vmatprep.subr.bf16.mxu0 0
        %656 = vmatpush1.bf16.msra.mxu0 0
        %657 = vmatprep.mubr.bf16.mxu0 0
        %658 = vmatmul.mubr.bf16.gmra.mrb[0].mxu0 %v575
        %v659 = vpop.f32.mrb[0].mxu0
        %v660 = vadd.f32 %v568, %v659
        %v661 = vpop.f32.mrb[0].mxu0
        %v662 = vpop.f32.mrb[0].mxu0
        %v663 = vpop.f32.mrb[0].mxu0
        %664 = vdwg.mxu0
        %v667 = vunpack.c.l.s4 1966171168
        %v668 = vunpack.c.0.s8 %v667
        %v669 = vlaneseq
        %v670 = vshrl.u32 %v669, 7
        %v671 = vsub.s32 %v668, %v670
        %v672 = vrot.slane %v660, %v671
        %v673 = vcombine.high %v672, %v672
        %v675 = vunpack.c.l.s4 1966171168
        %v676 = vunpack.c.0.s8 %v675
        %v677 = vlaneseq
        %v678 = vshrl.u32 %v677, 7
        %v679 = vsub.s32 %v676, %v678
        %v680 = vrot.slane %v672, %v679
        %v682 = vunpack.c.l.s4 1966171168
        %v683 = vunpack.c.0.s8 %v682
        %v684 = vlaneseq
        %v685 = vshrl.u32 %v684, 7
        %v686 = vsub.s32 %v683, %v685
        %v687 = vrot.slane %v673, %v686
        %690 = vst [vmem:[%s333] sm:$0x1] %v680
        %691 = vst [vmem:[%s333 + $0x1] sm:$0x1] %v687
        %s692 = sand.u32 %s193, 1
        %s693 = scalar_lea.sflag [#allocation7], %s692
        %s694 = sand.u32 %s193, 1
        %s695 = smul.addr %s694, 2
        %s696 = scalar_lea.vmem [#allocation11], %s695
        // Predicated region
        $region61: #{tpu_custom_call.1} parent=47 // pred_check
          %p697 = pneg %p203
        $region62: #{tpu_custom_call.1} parent=47 // pred_check_branch
          %699 = sbr.rel (%p697) target = $region64
        $region63: #{tpu_custom_call.1} parent=47 // pred_region
          %s700 = smul.u32 2, %s33
          %s702 = ssub.s32 32, 32
          %703 = vsyncadd %s693, %s702
          %s704 = smul.addr %s700, 16
          %s705 = scalar_lea.hbm %s8, %s704
          %s706 = sshll.u32 %s696, 4
          %s707 = int_to_ptr.vmem [resolvable:$true] %s706
          %712 = dma.vmem_to_hbm [thread:$0]  %s707, 32, %s705, %s693, 16, 16, 1
        $region64: #{tpu_custom_call.1} parent=47 // pred_fallthru
          _
      $region48: #{tpu_custom_call.1} parent=5 // pred_fallthru
        _
      %p713 = scmp.le.s32.totalorder 2, %s28
      // Predicated region
      $region65: #{tpu_custom_call.1} parent=5 // pred_check
        %p714 = pneg %p713
      $region66: #{tpu_custom_call.1} parent=5 // pred_check_branch
        %716 = sbr.rel (%p714) target = $region68
      $region67: #{tpu_custom_call.1} parent=5 // pred_region
        %s717 = ssub.s32 %s28, 2
        // Predicated region
        $region69: #{tpu_custom_call.1} parent=67 // pred_check
          %p718 = pneg %p209
        $region70: #{tpu_custom_call.1} parent=67 // pred_check_branch
          %720 = sbr.rel (%p718) target = $region72
        $region71: #{tpu_custom_call.1} parent=67 // pred_region
          %s721 = sand.u32 %s194, 1
          %s722 = scalar_lea.sflag [#allocation7], %s721
          %s723 = sand.u32 %s194, 1
          %s724 = smul.addr %s723, 2
          %s725 = scalar_lea.vmem [#allocation11], %s724
          %726 = dma.done %s722, 32
        $region72: #{tpu_custom_call.1} parent=67 // pred_fallthru
          _
      $region68: #{tpu_custom_call.1} parent=5 // pred_fallthru
        _
    $region6: #{tpu_custom_call.1} parent=1 // loop_footer
      %s32 = sadd.s32 1, %s28
    $region7: #{tpu_custom_call.1} parent=1 // loop_footer_branch
      %27 = sbr.rel target = $region3
    $region8: #{tpu_custom_call.1} parent=1 // loop_exit
      _
    %727 = vsyncpa [#allocation6], 1
    %s728 = scalar_lea.sflag [#allocation6], 1
    %729 = vsyncpa %s728, 1
    %730 = vsyncpa [#allocation9], 1
    %731 = vsyncpa [#allocation7], 1
    %s732 = scalar_lea.sflag [#allocation7], 1
    %733 = vsyncpa %s732, 1

</llo_original>
